<compile_context>
chip_gen: v7x
topology: tpu7x:2x2x1
jax: 0.10.0
libtpu: 0.0.40
codegen_flags: <defaults>
</compile_context>

<pallas_src>
import functools

import jax
import jax.numpy as jnp
from jax.experimental import pallas as pl
from jax.experimental.pallas import tpu as pltpu


def _round_up(x, m):
    return ((x + m - 1) // m) * m


# ------------------------------ Pallas kernel ------------------------------ #
def _nrnn_agent_kernel(
    # inputs
    x_ref, h_ref,
    w1_ref, b1_ref,
    wi_ref, bi_ref,
    wh_ref, bh_ref,
    g_ref, beta_ref,
    wq_ref, bq_ref,
    # outputs
    hh_ref, q_ref,
    *, H: int, use_layer_norm: bool,
):
    x = x_ref[...]                       # (tile, E) compute_dtype
    h = h_ref[...]                       # (tile, H) f32

    # fc1 + ReLU (f32 accumulation on the MXU)
    xf = jnp.dot(x, w1_ref[...], preferred_element_type=jnp.float32) + b1_ref[...]
    xf = jnp.maximum(xf, 0.0)

    # GRU gates as two packed (·,H)@(H,3H) matmuls accumulated in f32.
    # PyTorch gate order r, z, n; b_hn stays inside r*(...) via the gh term.
    mm_dtype = wi_ref.dtype
    gi = jnp.dot(xf.astype(mm_dtype), wi_ref[...],
                 preferred_element_type=jnp.float32) + bi_ref[...]
    gh = jnp.dot(h.astype(mm_dtype), wh_ref[...],
                 preferred_element_type=jnp.float32) + bh_ref[...]

    r = jax.nn.sigmoid(gi[:, 0 * H:1 * H] + gh[:, 0 * H:1 * H])
    z = jax.nn.sigmoid(gi[:, 1 * H:2 * H] + gh[:, 1 * H:2 * H])
    n = jnp.tanh(gi[:, 2 * H:3 * H] + r * gh[:, 2 * H:3 * H])
    hh = (1.0 - z) * n + z * h
    hh_ref[...] = hh

    if use_layer_norm:
        inv_h = 1.0 / float(H)
        s = jnp.sum(hh, axis=-1, keepdims=True)
        s2 = jnp.sum(hh * hh, axis=-1, keepdims=True)
        mean = s * inv_h
        var = s2 * inv_h - mean * mean
        feat = (hh - mean) * jax.lax.rsqrt(var + 1e-5) * g_ref[...] + beta_ref[...]
    else:
        feat = hh

    # merged heads, lane-dense (multiple-of-128) output, stored in q_ref.dtype
    q = jnp.dot(feat.astype(wq_ref.dtype), wq_ref[...],
                preferred_element_type=jnp.float32) + bq_ref[...]
    q_ref[...] = q.astype(q_ref.dtype)


# --------------------- one-time wrapper-side weight packing ----------------- #
def pack_params(params, *, compute_dtype=jnp.bfloat16):
    """Pack / pad / cast weights once (call outside the per-timestep loop)."""
    H = params["w1"].shape[1]
    a1 = params["wq1"].shape[1]
    a2 = params["wq2"].shape[1]
    AQ = a1 + a2
    AQ_pad = _round_up(max(AQ, 128), 128)

    packed = {
        "w1": params["w1"].astype(compute_dtype),                          # (E, H)
        "b1": params["b1"].astype(jnp.float32),                            # (1, H)
        "wi": jnp.concatenate([params["wir"], params["wiz"], params["win"]],
                              axis=1).astype(compute_dtype),               # (H, 3H)
        "bi": jnp.concatenate([params["bir"], params["biz"], params["bin"]],
                              axis=1).astype(jnp.float32),                 # (1, 3H)
        "wh": jnp.concatenate([params["whr"], params["whz"], params["whn"]],
                              axis=1).astype(compute_dtype),               # (H, 3H)
        "bh": jnp.concatenate([params["bhr"], params["bhz"], params["bhn"]],
                              axis=1).astype(jnp.float32),                 # (1, 3H)
        "gamma": params["gamma"].astype(jnp.float32),
        "beta": params["beta"].astype(jnp.float32),
        "wq": jnp.pad(jnp.concatenate([params["wq1"], params["wq2"]], axis=1),
                      ((0, 0), (0, AQ_pad - AQ))).astype(compute_dtype),   # (H, AQ_pad)
        "bq": jnp.pad(jnp.concatenate([params["bq1"], params["bq2"]], axis=1),
                      ((0, 0), (0, AQ_pad - AQ))).astype(jnp.float32),     # (1, AQ_pad)
    }
    meta = dict(H=H, a1=a1, a2=a2, AQ=AQ, AQ_pad=AQ_pad,
                compute_dtype=jnp.dtype(compute_dtype))
    return packed, meta


# ------------------------------ per-step forward ---------------------------- #
def nrnn_agent_forward(inputs, hidden_state, packed, meta, *,
                       use_layer_norm=True, row_tile=512):
    """inputs: (b, a, e) f32; hidden_state: (b, a, H) f32.
    Returns (q1 (b,a,A1), q2 (b,a,A2), hh (b,a,H)), all f32."""
    b, a, e = inputs.shape
    H = meta["H"]
    a1, a2, AQ, AQ_pad = meta["a1"], meta["a2"], meta["AQ"], meta["AQ_pad"]
    compute_dtype = meta["compute_dtype"]
    q_dtype = compute_dtype                    # lane-dense, narrow HBM write stream
    N = b * a

    # ---------------------- row tiling / padding ---------------------------- #
    row_align = 16 if jnp.dtype(compute_dtype).itemsize < 4 else 8
    row_tile = max(_round_up(row_tile, row_align), row_align)
    if N <= 2 * row_align:
        tile_n = _round_up(N, row_align)                    # too small to split
    else:
        # aim for >=4 grid steps (v7x megacore + DMA pipelining), cap at row_tile
        tile_n = min(row_tile, max(row_align, _round_up((N + 3) // 4, row_align)))
    N_pad = _round_up(N, tile_n)
    grid = (N_pad // tile_n,)

    x = inputs.reshape(N, e).astype(compute_dtype)
    h = hidden_state.reshape(N, H).astype(jnp.float32)
    if N_pad != N:
        x = jnp.pad(x, ((0, N_pad - N), (0, 0)))
        h = jnp.pad(h, ((0, N_pad - N), (0, 0)))

    operands = (x, h,
                packed["w1"], packed["b1"],
                packed["wi"], packed["bi"],
                packed["wh"], packed["bh"],
                packed["gamma"], packed["beta"],
                packed["wq"], packed["bq"])

    # -------------------------- VMEM budget estimate ------------------------ #
    weight_bytes = sum(int(arr.size) * arr.dtype.itemsize for arr in operands[2:])
    cdb = jnp.dtype(compute_dtype).itemsize
    tile_io_bytes = tile_n * (e * cdb + H * 4 + H * 4 + AQ_pad * jnp.dtype(q_dtype).itemsize)
    est = 2 * tile_io_bytes + 2 * weight_bytes + (4 << 20)   # pessimistic double-buffer
    vmem_limit = int(min(max(est, 32 << 20), 64 << 20))

    def row_spec(width):
        return pl.BlockSpec((tile_n, width), lambda i: (i, 0))

    def build(single_buffer_weights):
        def resident(arr):
            # full-array block, constant block index -> stays VMEM-resident
            if single_buffer_weights:
                return pl.BlockSpec(arr.shape, lambda i: (0, 0),
                                    pipeline_mode=pl.Buffered(1))
            return pl.BlockSpec(arr.shape, lambda i: (0, 0))

        in_specs = [row_spec(e), row_spec(H)] + [resident(arr) for arr in operands[2:]]
        return pl.pallas_call(
            functools.partial(_nrnn_agent_kernel, H=H, use_layer_norm=use_layer_norm),
            out_shape=(
                jax.ShapeDtypeStruct((N_pad, H), jnp.float32),   # hh (aliases h)
                jax.ShapeDtypeStruct((N_pad, AQ_pad), q_dtype),  # merged q heads
            ),
            grid=grid,
            in_specs=in_specs,
            out_specs=(row_spec(H), row_spec(AQ_pad)),
            input_output_aliases={1: 0},     # update hidden state in place
            compiler_params=pltpu.CompilerParams(
                dimension_semantics=("parallel",),
                vmem_limit_bytes=vmem_limit),
        )

    try:
        hh, q = build(True)(*operands)
    except Exception:
        # pipeline_mode=pl.Buffered(1) unsupported on this jax version ->
        # fall back to default double-buffered resident weights.
        hh, q = build(False)(*operands)

    q = q.astype(jnp.float32)
    q1 = q[:N, :a1].reshape(b, a, a1)
    q2 = q[:N, a1:AQ].reshape(b, a, a2)
    hh = hh[:N].reshape(b, a, H)
    return q1, q2, hh


# ------------------------ deterministic parameter init ---------------------- #
def init_params(key, input_shape, hidden, n_actions_1, n_actions_2):
    ks = jax.random.split(key, 16)
    u = lambda k, shape, bound: jax.random.uniform(k, shape, jnp.float32, -bound, bound)
    bh = 1.0 / jnp.sqrt(hidden)
    bi = 1.0 / jnp.sqrt(input_shape)
    return {
        "w1": u(ks[0], (input_shape, hidden), bi),
        "b1": u(ks[1], (1, hidden), bi),
        # GRU input-to-hidden (r, z, n) and hidden-to-hidden
        "wir": u(ks[2], (hidden, hidden), bh),
        "wiz": u(ks[3], (hidden, hidden), bh),
        "win": u(ks[4], (hidden, hidden), bh),
        "whr": u(ks[5], (hidden, hidden), bh),
        "whz": u(ks[6], (hidden, hidden), bh),
        "whn": u(ks[7], (hidden, hidden), bh),
        "bir": u(ks[8], (1, hidden), bh),
        "biz": u(ks[9], (1, hidden), bh),
        "bin": u(ks[10], (1, hidden), bh),
        "bhr": u(ks[11], (1, hidden), bh),
        "bhz": u(ks[12], (1, hidden), bh),
        "bhn": u(ks[13], (1, hidden), bh),
        # LayerNorm (PyTorch default: weight=1, bias=0)
        "gamma": jnp.ones((1, hidden), jnp.float32),
        "beta": jnp.zeros((1, hidden), jnp.float32),
        # heads
        "wq1": u(ks[14], (hidden, n_actions_1), bh),
        "bq1": jnp.zeros((1, n_actions_1), jnp.float32),
        "wq2": u(ks[15], (hidden, n_actions_2), bh),
        "bq2": jnp.zeros((1, n_actions_2), jnp.float32),
    }


# ----------------------------- pure-JAX reference --------------------------- #
def reference_forward(inputs, hidden_state, p, *, use_layer_norm=True,
                      matmul_dtype=jnp.float32):
    """PyTorch-structured reference. matmul_dtype casts matmul operands only
    (f32 accumulation), mirroring the kernel's compute_dtype."""
    b, a, e = inputs.shape
    H = p["w1"].shape[1]
    c = lambda t: t.astype(matmul_dtype)
    dot = lambda lhs, rhs: jnp.dot(c(lhs), c(rhs), preferred_element_type=jnp.float32)
    x = inputs.reshape(-1, e)
    h = hidden_state.reshape(-1, H).astype(jnp.float32)
    xf = jax.nn.relu(dot(x, p["w1"]) + p["b1"])
    r = jax.nn.sigmoid(dot(xf, p["wir"]) + p["bir"] + dot(h, p["whr"]) + p["bhr"])
    z = jax.nn.sigmoid(dot(xf, p["wiz"]) + p["biz"] + dot(h, p["whz"]) + p["bhz"])
    n = jnp.tanh(dot(xf, p["win"]) + p["bin"] + r * (dot(h, p["whn"]) + p["bhn"]))
    hh = (1.0 - z) * n + z * h
    if use_layer_norm:
        mean = hh.mean(-1, keepdims=True)
        var = ((hh - mean) ** 2).mean(-1, keepdims=True)
        feat = (hh - mean) * jax.lax.rsqrt(var + 1e-5) * p["gamma"] + p["beta"]
    else:
        feat = hh
    q1 = dot(feat, p["wq1"]) + p["bq1"]
    q2 = dot(feat, p["wq2"]) + p["bq2"]
    return q1.reshape(b, a, -1), q2.reshape(b, a, -1), hh.reshape(b, a, -1)


if __name__ == "__main__":
    # small config: b=2 agents=4, obs dim e=16, hidden=32, heads 6 and 10
    b, a, e = 2, 4, 16
    hidden, n_actions_1, n_actions_2 = 32, 6, 10
    use_layer_norm = True

    key = jax.random.PRNGKey(0)
    k_in, k_h, k_p = jax.random.split(key, 3)
    inputs = jax.random.normal(k_in, (b, a, e), jnp.float32)
    hidden_state = jax.random.normal(k_h, (b, a, hidden), jnp.float32)
    params = init_params(k_p, e, hidden, n_actions_1, n_actions_2)

    # --- f32 path: exact PyTorch forward semantics ---
    packed32, meta32 = pack_params(params, compute_dtype=jnp.float32)
    q1, q2, hh = nrnn_agent_forward(inputs, hidden_state, packed32, meta32,
                                    use_layer_norm=use_layer_norm)
    jax.block_until_ready((q1, q2, hh))
    q1_r, q2_r, hh_r = reference_forward(inputs, hidden_state, params,
                                         use_layer_norm=use_layer_norm,
                                         matmul_dtype=jnp.float32)
    assert q1.shape == (b, a, n_actions_1)
    assert q2.shape == (b, a, n_actions_2)
    assert hh.shape == (b, a, hidden)
    assert jnp.allclose(q1, q1_r, atol=1e-4)
    assert jnp.allclose(q2, q2_r, atol=1e-4)
    assert jnp.allclose(hh, hh_r, atol=1e-4)

    # --- bf16 matmul-operand path (perf default), matched-precision reference ---
    packed16, meta16 = pack_params(params, compute_dtype=jnp.bfloat16)
    q1b, q2b, hhb = nrnn_agent_forward(inputs, hidden_state, packed16, meta16,
                                       use_layer_norm=use_layer_norm)
    jax.block_until_ready((q1b, q2b, hhb))
    q1_rb, q2_rb, hh_rb = reference_forward(inputs, hidden_state, params,
                                            use_layer_norm=use_layer_norm,
                                            matmul_dtype=jnp.bfloat16)
    assert jnp.allclose(q1b, q1_rb, atol=2e-2)
    assert jnp.allclose(q2b, q2_rb, atol=2e-2)
    assert jnp.allclose(hhb, hh_rb, atol=1e-2)

    print("KERNEL_OK")
</pallas_src>

<mosaic_0001>
module attributes {stable_mosaic.version = 11 : i64} {
  func.func @_nrnn_agent_kernel(%arg0: i32, %arg1: memref<8x16xf32, #tpu.memory_space<vmem>>, %arg2: memref<8x32xf32, #tpu.memory_space<vmem>>, %arg3: memref<16x32xf32, #tpu.memory_space<vmem>>, %arg4: memref<1x32xf32, #tpu.memory_space<vmem>>, %arg5: memref<32x96xf32, #tpu.memory_space<vmem>>, %arg6: memref<1x96xf32, #tpu.memory_space<vmem>>, %arg7: memref<32x96xf32, #tpu.memory_space<vmem>>, %arg8: memref<1x96xf32, #tpu.memory_space<vmem>>, %arg9: memref<1x32xf32, #tpu.memory_space<vmem>>, %arg10: memref<1x32xf32, #tpu.memory_space<vmem>>, %arg11: memref<32x128xf32, #tpu.memory_space<vmem>>, %arg12: memref<1x128xf32, #tpu.memory_space<vmem>>, %arg13: memref<8x32xf32, #tpu.memory_space<vmem>>, %arg14: memref<8x128xf32, #tpu.memory_space<vmem>>) attributes {dimension_semantics = [#tpu.dimension_semantics<parallel>], iteration_bounds = array<i64: 1>, scalar_prefetch = 0 : i64, scratch_operands = 0 : i64, tpu.core_type = #tpu.core_type<tc>, window_params = [{transform_indices = @transform_0, window_bounds = array<i64: 8, 16>}, {transform_indices = @transform_1, window_bounds = array<i64: 8, 32>}, {pipeline_mode = #tpu.pipeline_mode<synchronous>, transform_indices = @transform_2, window_bounds = array<i64: 16, 32>}, {pipeline_mode = #tpu.pipeline_mode<synchronous>, transform_indices = @transform_3, window_bounds = array<i64: 1, 32>}, {pipeline_mode = #tpu.pipeline_mode<synchronous>, transform_indices = @transform_4, window_bounds = array<i64: 32, 96>}, {pipeline_mode = #tpu.pipeline_mode<synchronous>, transform_indices = @transform_5, window_bounds = array<i64: 1, 96>}, {pipeline_mode = #tpu.pipeline_mode<synchronous>, transform_indices = @transform_6, window_bounds = array<i64: 32, 96>}, {pipeline_mode = #tpu.pipeline_mode<synchronous>, transform_indices = @transform_7, window_bounds = array<i64: 1, 96>}, {pipeline_mode = #tpu.pipeline_mode<synchronous>, transform_indices = @transform_8, window_bounds = array<i64: 1, 32>}, {pipeline_mode = #tpu.pipeline_mode<synchronous>, transform_indices = @transform_9, window_bounds = array<i64: 1, 32>}, {pipeline_mode = #tpu.pipeline_mode<synchronous>, transform_indices = @transform_10, window_bounds = array<i64: 32, 128>}, {pipeline_mode = #tpu.pipeline_mode<synchronous>, transform_indices = @transform_11, window_bounds = array<i64: 1, 128>}, {transform_indices = @transform_12, window_bounds = array<i64: 8, 32>}, {transform_indices = @transform_13, window_bounds = array<i64: 8, 128>}]} {
    %c0 = arith.constant 0 : index
    %c0_0 = arith.constant 0 : index
    %0 = vector.load %arg1[%c0, %c0_0] : memref<8x16xf32, #tpu.memory_space<vmem>>, vector<8x16xf32>
    %c0_1 = arith.constant 0 : index
    %c0_2 = arith.constant 0 : index
    %1 = vector.load %arg2[%c0_1, %c0_2] : memref<8x32xf32, #tpu.memory_space<vmem>>, vector<8x32xf32>
    %c0_3 = arith.constant 0 : index
    %c0_4 = arith.constant 0 : index
    %2 = vector.load %arg3[%c0_3, %c0_4] : memref<16x32xf32, #tpu.memory_space<vmem>>, vector<16x32xf32>
    %cst = arith.constant dense<0.000000e+00> : vector<8x32xf32>
    %3 = tpu.matmul %0, %2, %cst {dimension_numbers = #tpu.dot_dimension_numbers<[1], [0], [0], [1], [0, 0, 1, 1], [], []>} : vector<8x16xf32>, vector<16x32xf32>, vector<8x32xf32> -> vector<8x32xf32>
    %c0_5 = arith.constant 0 : index
    %c0_6 = arith.constant 0 : index
    %4 = vector.load %arg4[%c0_5, %c0_6] : memref<1x32xf32, #tpu.memory_space<vmem>>, vector<1x32xf32>
    %5 = vector.broadcast %4 : vector<1x32xf32> to vector<8x32xf32>
    %6 = arith.addf %3, %5 : vector<8x32xf32>
    %cst_7 = arith.constant 0.000000e+00 : f32
    %7 = vector.broadcast %cst_7 : f32 to vector<8x32xf32>
    %8 = arith.maximumf %6, %7 : vector<8x32xf32>
    %c0_8 = arith.constant 0 : index
    %c0_9 = arith.constant 0 : index
    %9 = vector.load %arg5[%c0_8, %c0_9] : memref<32x96xf32, #tpu.memory_space<vmem>>, vector<32x96xf32>
    %cst_10 = arith.constant dense<0.000000e+00> : vector<8x96xf32>
    %10 = tpu.matmul %8, %9, %cst_10 {dimension_numbers = #tpu.dot_dimension_numbers<[1], [0], [0], [1], [0, 0, 1, 1], [], []>} : vector<8x32xf32>, vector<32x96xf32>, vector<8x96xf32> -> vector<8x96xf32>
    %c0_11 = arith.constant 0 : index
    %c0_12 = arith.constant 0 : index
    %11 = vector.load %arg6[%c0_11, %c0_12] : memref<1x96xf32, #tpu.memory_space<vmem>>, vector<1x96xf32>
    %12 = vector.broadcast %11 : vector<1x96xf32> to vector<8x96xf32>
    %13 = arith.addf %10, %12 : vector<8x96xf32>
    %c0_13 = arith.constant 0 : index
    %c0_14 = arith.constant 0 : index
    %14 = vector.load %arg7[%c0_13, %c0_14] : memref<32x96xf32, #tpu.memory_space<vmem>>, vector<32x96xf32>
    %cst_15 = arith.constant dense<0.000000e+00> : vector<8x96xf32>
    %15 = tpu.matmul %1, %14, %cst_15 {dimension_numbers = #tpu.dot_dimension_numbers<[1], [0], [0], [1], [0, 0, 1, 1], [], []>} : vector<8x32xf32>, vector<32x96xf32>, vector<8x96xf32> -> vector<8x96xf32>
    %c0_16 = arith.constant 0 : index
    %c0_17 = arith.constant 0 : index
    %16 = vector.load %arg8[%c0_16, %c0_17] : memref<1x96xf32, #tpu.memory_space<vmem>>, vector<1x96xf32>
    %17 = vector.broadcast %16 : vector<1x96xf32> to vector<8x96xf32>
    %18 = arith.addf %15, %17 : vector<8x96xf32>
    %19 = vector.extract_strided_slice %13 {offsets = [0, 0], sizes = [8, 32], strides = [1, 1]} : vector<8x96xf32> to vector<8x32xf32>
    %20 = vector.extract_strided_slice %18 {offsets = [0, 0], sizes = [8, 32], strides = [1, 1]} : vector<8x96xf32> to vector<8x32xf32>
    %21 = arith.addf %19, %20 : vector<8x32xf32>
    %22 = arith.negf %21 : vector<8x32xf32>
    %23 = math.exp %22 : vector<8x32xf32>
    %cst_18 = arith.constant 1.000000e+00 : f32
    %24 = vector.broadcast %cst_18 : f32 to vector<8x32xf32>
    %25 = arith.addf %24, %23 : vector<8x32xf32>
    %26 = arith.divf %24, %25 : vector<8x32xf32>
    %27 = vector.extract_strided_slice %13 {offsets = [0, 32], sizes = [8, 32], strides = [1, 1]} : vector<8x96xf32> to vector<8x32xf32>
    %28 = vector.extract_strided_slice %18 {offsets = [0, 32], sizes = [8, 32], strides = [1, 1]} : vector<8x96xf32> to vector<8x32xf32>
    %29 = arith.addf %27, %28 : vector<8x32xf32>
    %30 = arith.negf %29 : vector<8x32xf32>
    %31 = math.exp %30 : vector<8x32xf32>
    %cst_19 = arith.constant 1.000000e+00 : f32
    %32 = vector.broadcast %cst_19 : f32 to vector<8x32xf32>
    %33 = arith.addf %32, %31 : vector<8x32xf32>
    %34 = arith.divf %32, %33 : vector<8x32xf32>
    %35 = vector.extract_strided_slice %13 {offsets = [0, 64], sizes = [8, 32], strides = [1, 1]} : vector<8x96xf32> to vector<8x32xf32>
    %36 = vector.extract_strided_slice %18 {offsets = [0, 64], sizes = [8, 32], strides = [1, 1]} : vector<8x96xf32> to vector<8x32xf32>
    %37 = arith.mulf %26, %36 : vector<8x32xf32>
    %38 = arith.addf %35, %37 : vector<8x32xf32>
    %39 = math.tanh %38 : vector<8x32xf32>
    %cst_20 = arith.constant 1.000000e+00 : f32
    %40 = vector.broadcast %cst_20 : f32 to vector<8x32xf32>
    %41 = arith.subf %40, %34 : vector<8x32xf32>
    %42 = arith.mulf %41, %39 : vector<8x32xf32>
    %43 = arith.mulf %34, %1 : vector<8x32xf32>
    %44 = arith.addf %42, %43 : vector<8x32xf32>
    %c0_21 = arith.constant 0 : index
    %c0_22 = arith.constant 0 : index
    %45 = vector.load %arg13[%c0_21, %c0_22] : memref<8x32xf32, #tpu.memory_space<vmem>>, vector<8x32xf32>
    tpu.vector_store %arg13[%c0_21, %c0_22], %44 {strides = array<i32>} : memref<8x32xf32, #tpu.memory_space<vmem>>, vector<8x32xf32>,
    %cst_23 = arith.constant dense<0.000000e+00> : vector<8xf32>
    %46 = vector.multi_reduction <add>, %44, %cst_23 [1] : vector<8x32xf32> to vector<8xf32>
    %47 = vector.shape_cast %46 : vector<8xf32> to vector<8x1xf32>
    %48 = arith.mulf %44, %44 : vector<8x32xf32>
    %cst_24 = arith.constant dense<0.000000e+00> : vector<8xf32>
    %49 = vector.multi_reduction <add>, %48, %cst_24 [1] : vector<8x32xf32> to vector<8xf32>
    %50 = vector.shape_cast %49 : vector<8xf32> to vector<8x1xf32>
    %cst_25 = arith.constant 3.125000e-02 : f32
    %51 = vector.broadcast %cst_25 : f32 to vector<8x1xf32>
    %52 = arith.mulf %47, %51 : vector<8x1xf32>
    %cst_26 = arith.constant 3.125000e-02 : f32
    %53 = vector.broadcast %cst_26 : f32 to vector<8x1xf32>
    %54 = arith.mulf %50, %53 : vector<8x1xf32>
    %55 = arith.mulf %52, %52 : vector<8x1xf32>
    %56 = arith.subf %54, %55 : vector<8x1xf32>
    %57 = vector.broadcast %52 : vector<8x1xf32> to vector<8x32xf32>
    %58 = arith.subf %44, %57 : vector<8x32xf32>
    %cst_27 = arith.constant 9.99999974E-6 : f32
    %59 = vector.broadcast %cst_27 : f32 to vector<8x1xf32>
    %60 = arith.addf %56, %59 : vector<8x1xf32>
    %61 = math.rsqrt %60 : vector<8x1xf32>
    %62 = vector.broadcast %61 : vector<8x1xf32> to vector<8x32xf32>
    %63 = arith.mulf %58, %62 : vector<8x32xf32>
    %c0_28 = arith.constant 0 : index
    %c0_29 = arith.constant 0 : index
    %64 = vector.load %arg9[%c0_28, %c0_29] : memref<1x32xf32, #tpu.memory_space<vmem>>, vector<1x32xf32>
    %65 = vector.broadcast %64 : vector<1x32xf32> to vector<8x32xf32>
    %66 = arith.mulf %63, %65 : vector<8x32xf32>
    %c0_30 = arith.constant 0 : index
    %c0_31 = arith.constant 0 : index
    %67 = vector.load %arg10[%c0_30, %c0_31] : memref<1x32xf32, #tpu.memory_space<vmem>>, vector<1x32xf32>
    %68 = vector.broadcast %67 : vector<1x32xf32> to vector<8x32xf32>
    %69 = arith.addf %66, %68 : vector<8x32xf32>
    %c0_32 = arith.constant 0 : index
    %c0_33 = arith.constant 0 : index
    %70 = vector.load %arg11[%c0_32, %c0_33] : memref<32x128xf32, #tpu.memory_space<vmem>>, vector<32x128xf32>
    %cst_34 = arith.constant dense<0.000000e+00> : vector<8x128xf32>
    %71 = tpu.matmul %69, %70, %cst_34 {dimension_numbers = #tpu.dot_dimension_numbers<[1], [0], [0], [1], [0, 0, 1, 1], [], []>} : vector<8x32xf32>, vector<32x128xf32>, vector<8x128xf32> -> vector<8x128xf32>
    %c0_35 = arith.constant 0 : index
    %c0_36 = arith.constant 0 : index
    %72 = vector.load %arg12[%c0_35, %c0_36] : memref<1x128xf32, #tpu.memory_space<vmem>>, vector<1x128xf32>
    %73 = vector.broadcast %72 : vector<1x128xf32> to vector<8x128xf32>
    %74 = arith.addf %71, %73 : vector<8x128xf32>
    %c0_37 = arith.constant 0 : index
    %c0_38 = arith.constant 0 : index
    %75 = vector.load %arg14[%c0_37, %c0_38] : memref<8x128xf32, #tpu.memory_space<vmem>>, vector<8x128xf32>
    tpu.vector_store %arg14[%c0_37, %c0_38], %74 {strides = array<i32>} : memref<8x128xf32, #tpu.memory_space<vmem>>, vector<8x128xf32>,
    return
  }
  func.func @transform_0(%arg0: i32) -> (i32, i32) {
    %c0_i32 = arith.constant 0 : i32
    %c0_i32_0 = arith.constant 0 : i32
    return %arg0, %c0_i32 : i32, i32
  }
  func.func @transform_1(%arg0: i32) -> (i32, i32) {
    %c0_i32 = arith.constant 0 : i32
    %c0_i32_0 = arith.constant 0 : i32
    return %arg0, %c0_i32 : i32, i32
  }
  func.func @transform_2(%arg0: i32) -> (i32, i32) {
    %c0_i32 = arith.constant 0 : i32
    %c0_i32_0 = arith.constant 0 : i32
    %c0_i32_1 = arith.constant 0 : i32
    return %c0_i32, %c0_i32_0 : i32, i32
  }
  func.func @transform_3(%arg0: i32) -> (i32, i32) {
    %c0_i32 = arith.constant 0 : i32
    %c0_i32_0 = arith.constant 0 : i32
    %c0_i32_1 = arith.constant 0 : i32
    return %c0_i32, %c0_i32_0 : i32, i32
  }
  func.func @transform_4(%arg0: i32) -> (i32, i32) {
    %c0_i32 = arith.constant 0 : i32
    %c0_i32_0 = arith.constant 0 : i32
    %c0_i32_1 = arith.constant 0 : i32
    return %c0_i32, %c0_i32_0 : i32, i32
  }
  func.func @transform_5(%arg0: i32) -> (i32, i32) {
    %c0_i32 = arith.constant 0 : i32
    %c0_i32_0 = arith.constant 0 : i32
    %c0_i32_1 = arith.constant 0 : i32
    return %c0_i32, %c0_i32_0 : i32, i32
  }
  func.func @transform_6(%arg0: i32) -> (i32, i32) {
    %c0_i32 = arith.constant 0 : i32
    %c0_i32_0 = arith.constant 0 : i32
    %c0_i32_1 = arith.constant 0 : i32
    return %c0_i32, %c0_i32_0 : i32, i32
  }
  func.func @transform_7(%arg0: i32) -> (i32, i32) {
    %c0_i32 = arith.constant 0 : i32
    %c0_i32_0 = arith.constant 0 : i32
    %c0_i32_1 = arith.constant 0 : i32
    return %c0_i32, %c0_i32_0 : i32, i32
  }
  func.func @transform_8(%arg0: i32) -> (i32, i32) {
    %c0_i32 = arith.constant 0 : i32
    %c0_i32_0 = arith.constant 0 : i32
    %c0_i32_1 = arith.constant 0 : i32
    return %c0_i32, %c0_i32_0 : i32, i32
  }
  func.func @transform_9(%arg0: i32) -> (i32, i32) {
    %c0_i32 = arith.constant 0 : i32
    %c0_i32_0 = arith.constant 0 : i32
    %c0_i32_1 = arith.constant 0 : i32
    return %c0_i32, %c0_i32_0 : i32, i32
  }
  func.func @transform_10(%arg0: i32) -> (i32, i32) {
    %c0_i32 = arith.constant 0 : i32
    %c0_i32_0 = arith.constant 0 : i32
    %c0_i32_1 = arith.constant 0 : i32
    return %c0_i32, %c0_i32_0 : i32, i32
  }
  func.func @transform_11(%arg0: i32) -> (i32, i32) {
    %c0_i32 = arith.constant 0 : i32
    %c0_i32_0 = arith.constant 0 : i32
    %c0_i32_1 = arith.constant 0 : i32
    return %c0_i32, %c0_i32_0 : i32, i32
  }
  func.func @transform_12(%arg0: i32) -> (i32, i32) {
    %c0_i32 = arith.constant 0 : i32
    %c0_i32_0 = arith.constant 0 : i32
    return %arg0, %c0_i32 : i32, i32
  }
  func.func @transform_13(%arg0: i32) -> (i32, i32) {
    %c0_i32 = arith.constant 0 : i32
    %c0_i32_0 = arith.constant 0 : i32
    return %arg0, %c0_i32 : i32, i32
  }
}

module attributes {stable_mosaic.version = 11 : i64} {
  func.func @_nrnn_agent_kernel(%arg0: i32, %arg1: memref<8x16xf32, #tpu.memory_space<vmem>>, %arg2: memref<8x32xf32, #tpu.memory_space<vmem>>, %arg3: memref<16x32xf32, #tpu.memory_space<vmem>>, %arg4: memref<1x32xf32, #tpu.memory_space<vmem>>, %arg5: memref<32x96xf32, #tpu.memory_space<vmem>>, %arg6: memref<1x96xf32, #tpu.memory_space<vmem>>, %arg7: memref<32x96xf32, #tpu.memory_space<vmem>>, %arg8: memref<1x96xf32, #tpu.memory_space<vmem>>, %arg9: memref<1x32xf32, #tpu.memory_space<vmem>>, %arg10: memref<1x32xf32, #tpu.memory_space<vmem>>, %arg11: memref<32x128xf32, #tpu.memory_space<vmem>>, %arg12: memref<1x128xf32, #tpu.memory_space<vmem>>, %arg13: memref<8x32xf32, #tpu.memory_space<vmem>>, %arg14: memref<8x128xf32, #tpu.memory_space<vmem>>) attributes {dimension_semantics = [#tpu.dimension_semantics<parallel>], iteration_bounds = array<i64: 1>, scalar_prefetch = 0 : i64, scratch_operands = 0 : i64, tpu.core_type = #tpu.core_type<tc>, window_params = [{transform_indices = @transform_0, window_bounds = array<i64: 8, 16>}, {transform_indices = @transform_1, window_bounds = array<i64: 8, 32>}, {pipeline_mode = #tpu.pipeline_mode<synchronous>, transform_indices = @transform_2, window_bounds = array<i64: 16, 32>}, {pipeline_mode = #tpu.pipeline_mode<synchronous>, transform_indices = @transform_3, window_bounds = array<i64: 1, 32>}, {pipeline_mode = #tpu.pipeline_mode<synchronous>, transform_indices = @transform_4, window_bounds = array<i64: 32, 96>}, {pipeline_mode = #tpu.pipeline_mode<synchronous>, transform_indices = @transform_5, window_bounds = array<i64: 1, 96>}, {pipeline_mode = #tpu.pipeline_mode<synchronous>, transform_indices = @transform_6, window_bounds = array<i64: 32, 96>}, {pipeline_mode = #tpu.pipeline_mode<synchronous>, transform_indices = @transform_7, window_bounds = array<i64: 1, 96>}, {pipeline_mode = #tpu.pipeline_mode<synchronous>, transform_indices = @transform_8, window_bounds = array<i64: 1, 32>}, {pipeline_mode = #tpu.pipeline_mode<synchronous>, transform_indices = @transform_9, window_bounds = array<i64: 1, 32>}, {pipeline_mode = #tpu.pipeline_mode<synchronous>, transform_indices = @transform_10, window_bounds = array<i64: 32, 128>}, {pipeline_mode = #tpu.pipeline_mode<synchronous>, transform_indices = @transform_11, window_bounds = array<i64: 1, 128>}, {transform_indices = @transform_12, window_bounds = array<i64: 8, 32>}, {transform_indices = @transform_13, window_bounds = array<i64: 8, 128>}]} {
    %c0 = arith.constant 0 : index
    %c0_0 = arith.constant 0 : index
    %0 = vector.load %arg1[%c0, %c0_0] : memref<8x16xf32, #tpu.memory_space<vmem>>, vector<8x16xf32>
    %c0_1 = arith.constant 0 : index
    %c0_2 = arith.constant 0 : index
    %1 = vector.load %arg2[%c0_1, %c0_2] : memref<8x32xf32, #tpu.memory_space<vmem>>, vector<8x32xf32>
    %c0_3 = arith.constant 0 : index
    %c0_4 = arith.constant 0 : index
    %2 = vector.load %arg3[%c0_3, %c0_4] : memref<16x32xf32, #tpu.memory_space<vmem>>, vector<16x32xf32>
    %cst = arith.constant dense<0.000000e+00> : vector<8x32xf32>
    %3 = tpu.matmul %0, %2, %cst {dimension_numbers = #tpu.dot_dimension_numbers<[1], [0], [0], [1], [0, 0, 1, 1], [], []>} : vector<8x16xf32>, vector<16x32xf32>, vector<8x32xf32> -> vector<8x32xf32>
    %c0_5 = arith.constant 0 : index
    %c0_6 = arith.constant 0 : index
    %4 = vector.load %arg4[%c0_5, %c0_6] : memref<1x32xf32, #tpu.memory_space<vmem>>, vector<1x32xf32>
    %5 = vector.broadcast %4 : vector<1x32xf32> to vector<8x32xf32>
    %6 = arith.addf %3, %5 : vector<8x32xf32>
    %cst_7 = arith.constant 0.000000e+00 : f32
    %7 = vector.broadcast %cst_7 : f32 to vector<8x32xf32>
    %8 = arith.maximumf %6, %7 : vector<8x32xf32>
    %c0_8 = arith.constant 0 : index
    %c0_9 = arith.constant 0 : index
    %9 = vector.load %arg5[%c0_8, %c0_9] : memref<32x96xf32, #tpu.memory_space<vmem>>, vector<32x96xf32>
    %cst_10 = arith.constant dense<0.000000e+00> : vector<8x96xf32>
    %10 = tpu.matmul %8, %9, %cst_10 {dimension_numbers = #tpu.dot_dimension_numbers<[1], [0], [0], [1], [0, 0, 1, 1], [], []>} : vector<8x32xf32>, vector<32x96xf32>, vector<8x96xf32> -> vector<8x96xf32>
    %c0_11 = arith.constant 0 : index
    %c0_12 = arith.constant 0 : index
    %11 = vector.load %arg6[%c0_11, %c0_12] : memref<1x96xf32, #tpu.memory_space<vmem>>, vector<1x96xf32>
    %12 = vector.broadcast %11 : vector<1x96xf32> to vector<8x96xf32>
    %13 = arith.addf %10, %12 : vector<8x96xf32>
    %c0_13 = arith.constant 0 : index
    %c0_14 = arith.constant 0 : index
    %14 = vector.load %arg7[%c0_13, %c0_14] : memref<32x96xf32, #tpu.memory_space<vmem>>, vector<32x96xf32>
    %cst_15 = arith.constant dense<0.000000e+00> : vector<8x96xf32>
    %15 = tpu.matmul %1, %14, %cst_15 {dimension_numbers = #tpu.dot_dimension_numbers<[1], [0], [0], [1], [0, 0, 1, 1], [], []>} : vector<8x32xf32>, vector<32x96xf32>, vector<8x96xf32> -> vector<8x96xf32>
    %c0_16 = arith.constant 0 : index
    %c0_17 = arith.constant 0 : index
    %16 = vector.load %arg8[%c0_16, %c0_17] : memref<1x96xf32, #tpu.memory_space<vmem>>, vector<1x96xf32>
    %17 = vector.broadcast %16 : vector<1x96xf32> to vector<8x96xf32>
    %18 = arith.addf %15, %17 : vector<8x96xf32>
    %19 = vector.extract_strided_slice %13 {offsets = [0, 0], sizes = [8, 32], strides = [1, 1]} : vector<8x96xf32> to vector<8x32xf32>
    %20 = vector.extract_strided_slice %18 {offsets = [0, 0], sizes = [8, 32], strides = [1, 1]} : vector<8x96xf32> to vector<8x32xf32>
    %21 = arith.addf %19, %20 : vector<8x32xf32>
    %22 = arith.negf %21 : vector<8x32xf32>
    %23 = math.exp %22 : vector<8x32xf32>
    %cst_18 = arith.constant 1.000000e+00 : f32
    %24 = vector.broadcast %cst_18 : f32 to vector<8x32xf32>
    %25 = arith.addf %24, %23 : vector<8x32xf32>
    %26 = arith.divf %24, %25 : vector<8x32xf32>
    %27 = vector.extract_strided_slice %13 {offsets = [0, 32], sizes = [8, 32], strides = [1, 1]} : vector<8x96xf32> to vector<8x32xf32>
    %28 = vector.extract_strided_slice %18 {offsets = [0, 32], sizes = [8, 32], strides = [1, 1]} : vector<8x96xf32> to vector<8x32xf32>
    %29 = arith.addf %27, %28 : vector<8x32xf32>
    %30 = arith.negf %29 : vector<8x32xf32>
    %31 = math.exp %30 : vector<8x32xf32>
    %cst_19 = arith.constant 1.000000e+00 : f32
    %32 = vector.broadcast %cst_19 : f32 to vector<8x32xf32>
    %33 = arith.addf %32, %31 : vector<8x32xf32>
    %34 = arith.divf %32, %33 : vector<8x32xf32>
    %35 = vector.extract_strided_slice %13 {offsets = [0, 64], sizes = [8, 32], strides = [1, 1]} : vector<8x96xf32> to vector<8x32xf32>
    %36 = vector.extract_strided_slice %18 {offsets = [0, 64], sizes = [8, 32], strides = [1, 1]} : vector<8x96xf32> to vector<8x32xf32>
    %37 = arith.mulf %26, %36 : vector<8x32xf32>
    %38 = arith.addf %35, %37 : vector<8x32xf32>
    %39 = math.tanh %38 : vector<8x32xf32>
    %cst_20 = arith.constant 1.000000e+00 : f32
    %40 = vector.broadcast %cst_20 : f32 to vector<8x32xf32>
    %41 = arith.subf %40, %34 : vector<8x32xf32>
    %42 = arith.mulf %41, %39 : vector<8x32xf32>
    %43 = arith.mulf %34, %1 : vector<8x32xf32>
    %44 = arith.addf %42, %43 : vector<8x32xf32>
    %c0_21 = arith.constant 0 : index
    %c0_22 = arith.constant 0 : index
    %45 = vector.load %arg13[%c0_21, %c0_22] : memref<8x32xf32, #tpu.memory_space<vmem>>, vector<8x32xf32>
    tpu.vector_store %arg13[%c0_21, %c0_22], %44 {strides = array<i32>} : memref<8x32xf32, #tpu.memory_space<vmem>>, vector<8x32xf32>,
    %cst_23 = arith.constant dense<0.000000e+00> : vector<8xf32>
    %46 = vector.multi_reduction <add>, %44, %cst_23 [1] : vector<8x32xf32> to vector<8xf32>
    %47 = vector.shape_cast %46 : vector<8xf32> to vector<8x1xf32>
    %48 = arith.mulf %44, %44 : vector<8x32xf32>
    %cst_24 = arith.constant dense<0.000000e+00> : vector<8xf32>
    %49 = vector.multi_reduction <add>, %48, %cst_24 [1] : vector<8x32xf32> to vector<8xf32>
    %50 = vector.shape_cast %49 : vector<8xf32> to vector<8x1xf32>
    %cst_25 = arith.constant 3.125000e-02 : f32
    %51 = vector.broadcast %cst_25 : f32 to vector<8x1xf32>
    %52 = arith.mulf %47, %51 : vector<8x1xf32>
    %cst_26 = arith.constant 3.125000e-02 : f32
    %53 = vector.broadcast %cst_26 : f32 to vector<8x1xf32>
    %54 = arith.mulf %50, %53 : vector<8x1xf32>
    %55 = arith.mulf %52, %52 : vector<8x1xf32>
    %56 = arith.subf %54, %55 : vector<8x1xf32>
    %57 = vector.broadcast %52 : vector<8x1xf32> to vector<8x32xf32>
    %58 = arith.subf %44, %57 : vector<8x32xf32>
    %cst_27 = arith.constant 9.99999974E-6 : f32
    %59 = vector.broadcast %cst_27 : f32 to vector<8x1xf32>
    %60 = arith.addf %56, %59 : vector<8x1xf32>
    %61 = math.rsqrt %60 : vector<8x1xf32>
    %62 = vector.broadcast %61 : vector<8x1xf32> to vector<8x32xf32>
    %63 = arith.mulf %58, %62 : vector<8x32xf32>
    %c0_28 = arith.constant 0 : index
    %c0_29 = arith.constant 0 : index
    %64 = vector.load %arg9[%c0_28, %c0_29] : memref<1x32xf32, #tpu.memory_space<vmem>>, vector<1x32xf32>
    %65 = vector.broadcast %64 : vector<1x32xf32> to vector<8x32xf32>
    %66 = arith.mulf %63, %65 : vector<8x32xf32>
    %c0_30 = arith.constant 0 : index
    %c0_31 = arith.constant 0 : index
    %67 = vector.load %arg10[%c0_30, %c0_31] : memref<1x32xf32, #tpu.memory_space<vmem>>, vector<1x32xf32>
    %68 = vector.broadcast %67 : vector<1x32xf32> to vector<8x32xf32>
    %69 = arith.addf %66, %68 : vector<8x32xf32>
    %c0_32 = arith.constant 0 : index
    %c0_33 = arith.constant 0 : index
    %70 = vector.load %arg11[%c0_32, %c0_33] : memref<32x128xf32, #tpu.memory_space<vmem>>, vector<32x128xf32>
    %cst_34 = arith.constant dense<0.000000e+00> : vector<8x128xf32>
    %71 = tpu.matmul %69, %70, %cst_34 {dimension_numbers = #tpu.dot_dimension_numbers<[1], [0], [0], [1], [0, 0, 1, 1], [], []>} : vector<8x32xf32>, vector<32x128xf32>, vector<8x128xf32> -> vector<8x128xf32>
    %c0_35 = arith.constant 0 : index
    %c0_36 = arith.constant 0 : index
    %72 = vector.load %arg12[%c0_35, %c0_36] : memref<1x128xf32, #tpu.memory_space<vmem>>, vector<1x128xf32>
    %73 = vector.broadcast %72 : vector<1x128xf32> to vector<8x128xf32>
    %74 = arith.addf %71, %73 : vector<8x128xf32>
    %c0_37 = arith.constant 0 : index
    %c0_38 = arith.constant 0 : index
    %75 = vector.load %arg14[%c0_37, %c0_38] : memref<8x128xf32, #tpu.memory_space<vmem>>, vector<8x128xf32>
    tpu.vector_store %arg14[%c0_37, %c0_38], %74 {strides = array<i32>} : memref<8x128xf32, #tpu.memory_space<vmem>>, vector<8x128xf32>,
    return
  }
  func.func @transform_0(%arg0: i32) -> (i32, i32) {
    %c0_i32 = arith.constant 0 : i32
    %c0_i32_0 = arith.constant 0 : i32
    return %arg0, %c0_i32 : i32, i32
  }
  func.func @transform_1(%arg0: i32) -> (i32, i32) {
    %c0_i32 = arith.constant 0 : i32
    %c0_i32_0 = arith.constant 0 : i32
    return %arg0, %c0_i32 : i32, i32
  }
  func.func @transform_2(%arg0: i32) -> (i32, i32) {
    %c0_i32 = arith.constant 0 : i32
    %c0_i32_0 = arith.constant 0 : i32
    %c0_i32_1 = arith.constant 0 : i32
    return %c0_i32, %c0_i32_0 : i32, i32
  }
  func.func @transform_3(%arg0: i32) -> (i32, i32) {
    %c0_i32 = arith.constant 0 : i32
    %c0_i32_0 = arith.constant 0 : i32
    %c0_i32_1 = arith.constant 0 : i32
    return %c0_i32, %c0_i32_0 : i32, i32
  }
  func.func @transform_4(%arg0: i32) -> (i32, i32) {
    %c0_i32 = arith.constant 0 : i32
    %c0_i32_0 = arith.constant 0 : i32
    %c0_i32_1 = arith.constant 0 : i32
    return %c0_i32, %c0_i32_0 : i32, i32
  }
  func.func @transform_5(%arg0: i32) -> (i32, i32) {
    %c0_i32 = arith.constant 0 : i32
    %c0_i32_0 = arith.constant 0 : i32
    %c0_i32_1 = arith.constant 0 : i32
    return %c0_i32, %c0_i32_0 : i32, i32
  }
  func.func @transform_6(%arg0: i32) -> (i32, i32) {
    %c0_i32 = arith.constant 0 : i32
    %c0_i32_0 = arith.constant 0 : i32
    %c0_i32_1 = arith.constant 0 : i32
    return %c0_i32, %c0_i32_0 : i32, i32
  }
  func.func @transform_7(%arg0: i32) -> (i32, i32) {
    %c0_i32 = arith.constant 0 : i32
    %c0_i32_0 = arith.constant 0 : i32
    %c0_i32_1 = arith.constant 0 : i32
    return %c0_i32, %c0_i32_0 : i32, i32
  }
  func.func @transform_8(%arg0: i32) -> (i32, i32) {
    %c0_i32 = arith.constant 0 : i32
    %c0_i32_0 = arith.constant 0 : i32
    %c0_i32_1 = arith.constant 0 : i32
    return %c0_i32, %c0_i32_0 : i32, i32
  }
  func.func @transform_9(%arg0: i32) -> (i32, i32) {
    %c0_i32 = arith.constant 0 : i32
    %c0_i32_0 = arith.constant 0 : i32
    %c0_i32_1 = arith.constant 0 : i32
    return %c0_i32, %c0_i32_0 : i32, i32
  }
  func.func @transform_10(%arg0: i32) -> (i32, i32) {
    %c0_i32 = arith.constant 0 : i32
    %c0_i32_0 = arith.constant 0 : i32
    %c0_i32_1 = arith.constant 0 : i32
    return %c0_i32, %c0_i32_0 : i32, i32
  }
  func.func @transform_11(%arg0: i32) -> (i32, i32) {
    %c0_i32 = arith.constant 0 : i32
    %c0_i32_0 = arith.constant 0 : i32
    %c0_i32_1 = arith.constant 0 : i32
    return %c0_i32, %c0_i32_0 : i32, i32
  }
  func.func @transform_12(%arg0: i32) -> (i32, i32) {
    %c0_i32 = arith.constant 0 : i32
    %c0_i32_0 = arith.constant 0 : i32
    return %arg0, %c0_i32 : i32, i32
  }
  func.func @transform_13(%arg0: i32) -> (i32, i32) {
    %c0_i32 = arith.constant 0 : i32
    %c0_i32_0 = arith.constant 0 : i32
    return %arg0, %c0_i32 : i32, i32
  }
}

</mosaic_0001>

<llo_original>
// kernel: tpu_custom_call.1
$region0: #{tpu_custom_call.1}
  #allocation0 [shape = 'u32[]', space=smem, size = 0x4, offset = 0x4, fixed_abs, tag = 'smem constant byte address 0x4 - core index']
  #allocation1 [shape = 'u32[144,128]{1,0:T(1,128)}', space=vmem, size = 0x12000, scoped, tag = 'internal scratch']
  %s0 = inlined_call_operand.vmem [shape: f32[8,16], index: 0, kind: input, shape index: {}]
  %s1 = inlined_call_operand.hbm [shape: f32[8,32], index: 1, kind: input, shape index: {}, may-alias: {1,12}]
  %s2 = inlined_call_operand.vmem [shape: f32[16,32], index: 2, kind: input, shape index: {}]
  %s3 = inlined_call_operand.vmem [shape: f32[1,32], index: 3, kind: input, shape index: {}]
  %s4 = inlined_call_operand.vmem [shape: f32[32,96], index: 4, kind: input, shape index: {}]
  %s5 = inlined_call_operand.hbm [shape: f32[1,96], index: 5, kind: input, shape index: {}]
  %s6 = inlined_call_operand.hbm [shape: f32[32,96], index: 6, kind: input, shape index: {}]
  %s7 = inlined_call_operand.hbm [shape: f32[1,96], index: 7, kind: input, shape index: {}]
  %s8 = inlined_call_operand.hbm [shape: f32[1,32], index: 8, kind: input, shape index: {}]
  %s9 = inlined_call_operand.hbm [shape: f32[1,32], index: 9, kind: input, shape index: {}]
  %s10 = inlined_call_operand.hbm [shape: f32[32,128], index: 10, kind: input, shape index: {}]
  %s11 = inlined_call_operand.hbm [shape: f32[1,128], index: 11, kind: input, shape index: {}]
  %s12 = inlined_call_operand.hbm [shape: f32[8,32], index: 12, kind: output, shape index: {0}, may-alias: {1,12}]
  %s13 = inlined_call_operand.hbm [shape: f32[8,128], index: 13, kind: output, shape index: {1}]
  %14 = xla_tuple %s12, %s13
  %s15 = sld [smem:[#allocation0]]
  $region98: #{tpu_custom_call.1} parent=0
    _
  %s17 = ssub.s32 1, %s15
  %s18 = scalar_select 0, %s17, %s15
  $region1: #{tpu_custom_call.1} parent=0
    #allocation2 [shape = 'u8[4096]{0}', space=vmem, size = 0x1000, scoped, tag = 'input window, operand 1, single buffered']
    #allocation3 [shape = 's32[1]{0}', space=sflag, size = 0x4, scoped, tag = 'scoped memory for tpu_custom_call.1']
    #allocation4 [shape = 's32[1]{0}', space=sflag, size = 0x4, scoped, tag = 'scoped memory for tpu_custom_call.1']
    #allocation5 [shape = 'u8[512]{0}', space=vmem, size = 0x400, scoped, tag = 'input window, operand 5, single buffered']
    #allocation6 [shape = 's32[1]{0}', space=sflag, size = 0x4, scoped, tag = 'scoped memory for tpu_custom_call.1']
    #allocation7 [shape = 'u8[16384]{0}', space=vmem, size = 0x4000, scoped, tag = 'input window, operand 6, single buffered']
    #allocation8 [shape = 'u8[512]{0}', space=vmem, size = 0x400, scoped, tag = 'input window, operand 7, single buffered']
    #allocation9 [shape = 's32[1]{0}', space=sflag, size = 0x4, scoped, tag = 'scoped memory for tpu_custom_call.1']
    #allocation10 [shape = 'u8[512]{0}', space=vmem, size = 0x400, scoped, tag = 'input window, operand 8, single buffered']
    #allocation11 [shape = 'u8[512]{0}', space=vmem, size = 0x400, scoped, tag = 'input window, operand 9, single buffered']
    #allocation12 [shape = 's32[1]{0}', space=sflag, size = 0x4, scoped, tag = 'scoped memory for tpu_custom_call.1']
    #allocation13 [shape = 'u8[16384]{0}', space=vmem, size = 0x4000, scoped, tag = 'input window, operand 10, single buffered']
    #allocation14 [shape = 'u8[512]{0}', space=vmem, size = 0x400, scoped, tag = 'input window, operand 11, single buffered']
    #allocation15 [shape = 's32[1]{0}', space=sflag, size = 0x4, scoped, tag = 'scoped memory for tpu_custom_call.1']
    #allocation16 [shape = 'u8[4096]{0}', space=vmem, size = 0x1000, scoped, tag = 'output window, operand 0, single buffered']
    #allocation17 [shape = 'u8[4096]{0}', space=vmem, size = 0x1000, scoped, tag = 'output window, operand 1, single buffered']
    #allocation18 [shape = 's32[1]{0}', space=sflag, size = 0x4, scoped, tag = 'scoped memory for tpu_custom_call.1']
    %19 = vsyncpa [#allocation3], 0
    %20 = vsyncpa [#allocation6], 0
    %21 = vsyncpa [#allocation9], 0
    %22 = vsyncpa [#allocation12], 0
    %23 = vsyncpa [#allocation15], 0
    %24 = vsyncpa [#allocation4], 0
    %25 = vsyncpa [#allocation18], 0
    // Predicated region
    $region2: #{tpu_custom_call.1} parent=1 // pred_check
      _
    $region3: #{tpu_custom_call.1} parent=1 // pred_check_branch
      %27 = sbr.rel (0) target = $region5
    $region4: #{tpu_custom_call.1} parent=1 // pred_region
      _
    $region5: #{tpu_custom_call.1} parent=1 // pred_fallthru
      _
    // Predicated region
    $region6: #{tpu_custom_call.1} parent=1 // pred_check
      _
    $region7: #{tpu_custom_call.1} parent=1 // pred_check_branch
      %29 = sbr.rel (0) target = $region9
    $region8: #{tpu_custom_call.1} parent=1 // pred_region
      %s31 = ssub.s32 128, 128
      %32 = vsyncadd [#allocation3], %s31
      %s34 = sshll.u32 [#allocation2], 4
      %s35 = int_to_ptr.vmem [resolvable:$true] %s34
      %37 = dma.hbm_to_vmem [thread:$0]  %s1, 128, %s35, [#allocation3]
    $region9: #{tpu_custom_call.1} parent=1 // pred_fallthru
      _
    // Predicated region
    $region10: #{tpu_custom_call.1} parent=1 // pred_check
      _
    $region11: #{tpu_custom_call.1} parent=1 // pred_check_branch
      %39 = sbr.rel (0) target = $region13
    $region12: #{tpu_custom_call.1} parent=1 // pred_region
      _
    $region13: #{tpu_custom_call.1} parent=1 // pred_fallthru
      _
    // Predicated region
    $region14: #{tpu_custom_call.1} parent=1 // pred_check
      _
    $region15: #{tpu_custom_call.1} parent=1 // pred_check_branch
      %41 = sbr.rel (0) target = $region17
    $region16: #{tpu_custom_call.1} parent=1 // pred_region
      _
    $region17: #{tpu_custom_call.1} parent=1 // pred_fallthru
      _
    // Predicated region
    $region18: #{tpu_custom_call.1} parent=1 // pred_check
      _
    $region19: #{tpu_custom_call.1} parent=1 // pred_check_branch
      %43 = sbr.rel (0) target = $region21
    $region20: #{tpu_custom_call.1} parent=1 // pred_region
      _
    $region21: #{tpu_custom_call.1} parent=1 // pred_fallthru
      _
    // Predicated region
    $region22: #{tpu_custom_call.1} parent=1 // pred_check
      _
    $region23: #{tpu_custom_call.1} parent=1 // pred_check_branch
      %45 = sbr.rel (0) target = $region25
    $region24: #{tpu_custom_call.1} parent=1 // pred_region
      %s47 = ssub.s32 16, 16
      %48 = vsyncadd [#allocation6], %s47
      %s50 = sshll.u32 [#allocation5], 4
      %s51 = int_to_ptr.vmem [resolvable:$true] %s50
      %53 = dma.hbm_to_vmem [thread:$0]  %s5, 16, %s51, [#allocation6]
    $region25: #{tpu_custom_call.1} parent=1 // pred_fallthru
      _
    // Predicated region
    $region26: #{tpu_custom_call.1} parent=1 // pred_check
      _
    $region27: #{tpu_custom_call.1} parent=1 // pred_check_branch
      %55 = sbr.rel (0) target = $region29
    $region28: #{tpu_custom_call.1} parent=1 // pred_region
      %s57 = ssub.s32 512, 512
      %58 = vsyncadd [#allocation6], %s57
      %s59 = sshll.u32 [#allocation7], 4
      %s60 = int_to_ptr.vmem [resolvable:$true] %s59
      %65 = dma.hbm_to_vmem [thread:$0]  %s6, 512, %s60, [#allocation6], 128, 128, 8
    $region29: #{tpu_custom_call.1} parent=1 // pred_fallthru
      _
    // Predicated region
    $region30: #{tpu_custom_call.1} parent=1 // pred_check
      _
    $region31: #{tpu_custom_call.1} parent=1 // pred_check_branch
      %67 = sbr.rel (0) target = $region33
    $region32: #{tpu_custom_call.1} parent=1 // pred_region
      %s69 = ssub.s32 16, 16
      %70 = vsyncadd [#allocation9], %s69
      %s72 = sshll.u32 [#allocation8], 4
      %s73 = int_to_ptr.vmem [resolvable:$true] %s72
      %75 = dma.hbm_to_vmem [thread:$0]  %s7, 16, %s73, [#allocation9]
    $region33: #{tpu_custom_call.1} parent=1 // pred_fallthru
      _
    // Predicated region
    $region34: #{tpu_custom_call.1} parent=1 // pred_check
      _
    $region35: #{tpu_custom_call.1} parent=1 // pred_check_branch
      %77 = sbr.rel (0) target = $region37
    $region36: #{tpu_custom_call.1} parent=1 // pred_region
      %s79 = ssub.s32 16, 16
      %80 = vsyncadd [#allocation9], %s79
      %s82 = sshll.u32 [#allocation10], 4
      %s83 = int_to_ptr.vmem [resolvable:$true] %s82
      %85 = dma.hbm_to_vmem [thread:$0]  %s8, 16, %s83, [#allocation9]
    $region37: #{tpu_custom_call.1} parent=1 // pred_fallthru
      _
    // Predicated region
    $region38: #{tpu_custom_call.1} parent=1 // pred_check
      _
    $region39: #{tpu_custom_call.1} parent=1 // pred_check_branch
      %87 = sbr.rel (0) target = $region41
    $region40: #{tpu_custom_call.1} parent=1 // pred_region
      %s89 = ssub.s32 16, 16
      %90 = vsyncadd [#allocation12], %s89
      %s92 = sshll.u32 [#allocation11], 4
      %s93 = int_to_ptr.vmem [resolvable:$true] %s92
      %95 = dma.hbm_to_vmem [thread:$0]  %s9, 16, %s93, [#allocation12]
    $region41: #{tpu_custom_call.1} parent=1 // pred_fallthru
      _
    // Predicated region
    $region42: #{tpu_custom_call.1} parent=1 // pred_check
      _
    $region43: #{tpu_custom_call.1} parent=1 // pred_check_branch
      %97 = sbr.rel (0) target = $region45
    $region44: #{tpu_custom_call.1} parent=1 // pred_region
      %s99 = ssub.s32 512, 512
      %100 = vsyncadd [#allocation12], %s99
      %s101 = sshll.u32 [#allocation13], 4
      %s102 = int_to_ptr.vmem [resolvable:$true] %s101
      %107 = dma.hbm_to_vmem [thread:$0]  %s10, 512, %s102, [#allocation12], 128, 128, 8
    $region45: #{tpu_custom_call.1} parent=1 // pred_fallthru
      _
    // Predicated region
    $region46: #{tpu_custom_call.1} parent=1 // pred_check
      _
    $region47: #{tpu_custom_call.1} parent=1 // pred_check_branch
      %109 = sbr.rel (0) target = $region49
    $region48: #{tpu_custom_call.1} parent=1 // pred_region
      %s111 = ssub.s32 16, 16
      %112 = vsyncadd [#allocation15], %s111
      %s114 = sshll.u32 [#allocation14], 4
      %s115 = int_to_ptr.vmem [resolvable:$true] %s114
      %117 = dma.hbm_to_vmem [thread:$0]  %s11, 16, %s115, [#allocation15]
    $region49: #{tpu_custom_call.1} parent=1 // pred_fallthru
      _
    // Predicated region
    $region50: #{tpu_custom_call.1} parent=1 // pred_check
      _
    $region51: #{tpu_custom_call.1} parent=1 // pred_check_branch
      %119 = sbr.rel (0) target = $region53
    $region52: #{tpu_custom_call.1} parent=1 // pred_region
      %120 = dma.done [#allocation3], 128
    $region53: #{tpu_custom_call.1} parent=1 // pred_fallthru
      _
    // Predicated region
    $region54: #{tpu_custom_call.1} parent=1 // pred_check
      _
    $region55: #{tpu_custom_call.1} parent=1 // pred_check_branch
      %122 = sbr.rel (0) target = $region57
    $region56: #{tpu_custom_call.1} parent=1 // pred_region
      %123 = dma.done [#allocation6], 16
    $region57: #{tpu_custom_call.1} parent=1 // pred_fallthru
      _
    // Predicated region
    $region58: #{tpu_custom_call.1} parent=1 // pred_check
      _
    $region59: #{tpu_custom_call.1} parent=1 // pred_check_branch
      %125 = sbr.rel (0) target = $region61
    $region60: #{tpu_custom_call.1} parent=1 // pred_region
      %126 = dma.done [#allocation6], 512
    $region61: #{tpu_custom_call.1} parent=1 // pred_fallthru
      _
    // Predicated region
    $region62: #{tpu_custom_call.1} parent=1 // pred_check
      _
    $region63: #{tpu_custom_call.1} parent=1 // pred_check_branch
      %128 = sbr.rel (0) target = $region65
    $region64: #{tpu_custom_call.1} parent=1 // pred_region
      %129 = dma.done [#allocation9], 16
    $region65: #{tpu_custom_call.1} parent=1 // pred_fallthru
      _
    // Predicated region
    $region66: #{tpu_custom_call.1} parent=1 // pred_check
      _
    $region67: #{tpu_custom_call.1} parent=1 // pred_check_branch
      %131 = sbr.rel (0) target = $region69
    $region68: #{tpu_custom_call.1} parent=1 // pred_region
      %132 = dma.done [#allocation9], 16
    $region69: #{tpu_custom_call.1} parent=1 // pred_fallthru
      _
    // Predicated region
    $region70: #{tpu_custom_call.1} parent=1 // pred_check
      _
    $region71: #{tpu_custom_call.1} parent=1 // pred_check_branch
      %134 = sbr.rel (0) target = $region73
    $region72: #{tpu_custom_call.1} parent=1 // pred_region
      %135 = dma.done [#allocation12], 16
    $region73: #{tpu_custom_call.1} parent=1 // pred_fallthru
      _
    // Predicated region
    $region74: #{tpu_custom_call.1} parent=1 // pred_check
      _
    $region75: #{tpu_custom_call.1} parent=1 // pred_check_branch
      %137 = sbr.rel (0) target = $region77
    $region76: #{tpu_custom_call.1} parent=1 // pred_region
      %138 = dma.done [#allocation12], 512
    $region77: #{tpu_custom_call.1} parent=1 // pred_fallthru
      _
    // Predicated region
    $region78: #{tpu_custom_call.1} parent=1 // pred_check
      _
    $region79: #{tpu_custom_call.1} parent=1 // pred_check_branch
      %140 = sbr.rel (0) target = $region81
    $region80: #{tpu_custom_call.1} parent=1 // pred_region
      %141 = dma.done [#allocation15], 16
    $region81: #{tpu_custom_call.1} parent=1 // pred_fallthru
      _
    %v142 = vld [vmem:[%s0] sm:$0xff]
    %v143 = vld [vmem:[#allocation2] sm:$0xff]
    %v144 = vld [vmem:[%s2] sm:$0xff]
    %v145 = vld [vmem:[%s2 + $0x8] sm:$0xff]
    %v146 = vld [vmem:[%s3] sm:$0x1]
    %v148 = vlaneseq
    %v149 = vshrl.u32 %v148, 7
    %v150 = vsub.s32 0, %v149
    %v151 = vrot.slane %v146, %v150
    %vm153 = vcmask 130048
    %v155 = vsel %vm153, %v142, 0
    %157 = vmatprep.subr.mxu0 0.0
    %158 = vmatpush1.msra.mxu0 %v144
    %159 = vmatprep.subr.mxu0 0.0
    %160 = vmatpush1.msra.mxu0 %v145
    %161 = vmatprep.subr.mxu0 0.0
    %162 = vmatpush1.msra.mxu0 0.0
    %163 = vmatprep.subr.mxu0 0.0
    %164 = vmatpush1.msra.mxu0 0.0
    %165 = vmatprep.subr.mxu0 0.0
    %166 = vmatpush1.msra.mxu0 0.0
    %167 = vmatprep.subr.mxu0 0.0
    %168 = vmatpush1.msra.mxu0 0.0
    %169 = vmatprep.subr.mxu0 0.0
    %170 = vmatpush1.msra.mxu0 0.0
    %171 = vmatprep.subr.mxu0 0.0
    %172 = vmatpush1.msra.mxu0 0.0
    %173 = vmatprep.subr.mxu0 0.0
    %174 = vmatpush1.msra.mxu0 0.0
    %175 = vmatprep.subr.mxu0 0.0
    %176 = vmatpush1.msra.mxu0 0.0
    %177 = vmatprep.subr.mxu0 0.0
    %178 = vmatpush1.msra.mxu0 0.0
    %179 = vmatprep.subr.mxu0 0.0
    %180 = vmatpush1.msra.mxu0 0.0
    %181 = vmatprep.subr.mxu0 0.0
    %182 = vmatpush1.msra.mxu0 0.0
    %183 = vmatprep.subr.mxu0 0.0
    %184 = vmatpush1.msra.mxu0 0.0
    %185 = vmatprep.subr.mxu0 0.0
    %186 = vmatpush1.msra.mxu0 0.0
    %187 = vmatprep.subr.mxu0 0.0
    %188 = vmatpush1.msra.mxu0 0.0
    %189 = vmatprep.subr.mxu0 0.0
    %190 = vmatpush1.msra.mxu0 0.0
    %191 = vmatprep.subr.mxu0 0.0
    %192 = vmatpush1.msra.mxu0 0.0
    %193 = vmatprep.subr.mxu0 0.0
    %194 = vmatpush1.msra.mxu0 0.0
    %195 = vmatprep.subr.mxu0 0.0
    %196 = vmatpush1.msra.mxu0 0.0
    %197 = vmatprep.subr.mxu0 0.0
    %198 = vmatpush1.msra.mxu0 0.0
    %199 = vmatprep.subr.mxu0 0.0
    %200 = vmatpush1.msra.mxu0 0.0
    %201 = vmatprep.subr.mxu0 0.0
    %202 = vmatpush1.msra.mxu0 0.0
    %203 = vmatprep.subr.mxu0 0.0
    %204 = vmatpush1.msra.mxu0 0.0
    %205 = vmatprep.subr.mxu0 0.0
    %206 = vmatpush1.msra.mxu0 0.0
    %207 = vmatprep.subr.mxu0 0.0
    %208 = vmatpush1.msra.mxu0 0.0
    %209 = vmatprep.subr.mxu0 0.0
    %210 = vmatpush1.msra.mxu0 0.0
    %211 = vmatprep.subr.mxu0 0.0
    %212 = vmatpush1.msra.mxu0 0.0
    %213 = vmatprep.subr.mxu0 0.0
    %214 = vmatpush1.msra.mxu0 0.0
    %215 = vmatprep.subr.mxu0 0.0
    %216 = vmatpush1.msra.mxu0 0.0
    %217 = vmatprep.subr.mxu0 0.0
    %218 = vmatpush1.msra.mxu0 0.0
    %219 = vmatprep.subr.mxu0 0.0
    %220 = vmatpush1.msra.mxu0 0.0
    %221 = vmatprep.mubr.f32.mxu0 0.0
    %222 = vmatmul.mubr.f32.gmra.mrb[0].mxu0 %v155
    %v223 = vpop.f32.mrb[0].mxu0
    %v224 = vadd.f32 %v151, %v223
    %v225 = vpop.f32.mrb[0].mxu0
    %226 = vdwg.mxu0
    %v227 = vmax.f32 %v224, 0.0
    %v228 = vld [vmem:[%s4] sm:$0xff]
    %v229 = vld [vmem:[%s4 + $0x8] sm:$0xff]
    %v230 = vld [vmem:[%s4 + $0x10] sm:$0xff]
    %v231 = vld [vmem:[%s4 + $0x18] sm:$0xff]
    %v232 = vld [vmem:[#allocation5] sm:$0x1]
    %v234 = vlaneseq
    %v235 = vshrl.u32 %v234, 7
    %v236 = vsub.s32 0, %v235
    %v237 = vrot.slane %v232, %v236
    %vm239 = vcmask 261120
    %v241 = vsel %vm239, %v227, 0
    %243 = vmatprep.subr.mxu0 0.0
    %244 = vmatpush1.msra.mxu0 %v228
    %245 = vmatprep.subr.mxu0 0.0
    %246 = vmatpush1.msra.mxu0 %v229
    %247 = vmatprep.subr.mxu0 0.0
    %248 = vmatpush1.msra.mxu0 %v230
    %249 = vmatprep.subr.mxu0 0.0
    %250 = vmatpush1.msra.mxu0 %v231
    %251 = vmatprep.subr.mxu0 0.0
    %252 = vmatpush1.msra.mxu0 0.0
    %253 = vmatprep.subr.mxu0 0.0
    %254 = vmatpush1.msra.mxu0 0.0
    %255 = vmatprep.subr.mxu0 0.0
    %256 = vmatpush1.msra.mxu0 0.0
    %257 = vmatprep.subr.mxu0 0.0
    %258 = vmatpush1.msra.mxu0 0.0
    %259 = vmatprep.subr.mxu0 0.0
    %260 = vmatpush1.msra.mxu0 0.0
    %261 = vmatprep.subr.mxu0 0.0
    %262 = vmatpush1.msra.mxu0 0.0
    %263 = vmatprep.subr.mxu0 0.0
    %264 = vmatpush1.msra.mxu0 0.0
    %265 = vmatprep.subr.mxu0 0.0
    %266 = vmatpush1.msra.mxu0 0.0
    %267 = vmatprep.subr.mxu0 0.0
    %268 = vmatpush1.msra.mxu0 0.0
    %269 = vmatprep.subr.mxu0 0.0
    %270 = vmatpush1.msra.mxu0 0.0
    %271 = vmatprep.subr.mxu0 0.0
    %272 = vmatpush1.msra.mxu0 0.0
    %273 = vmatprep.subr.mxu0 0.0
    %274 = vmatpush1.msra.mxu0 0.0
    %275 = vmatprep.subr.mxu0 0.0
    %276 = vmatpush1.msra.mxu0 0.0
    %277 = vmatprep.subr.mxu0 0.0
    %278 = vmatpush1.msra.mxu0 0.0
    %279 = vmatprep.subr.mxu0 0.0
    %280 = vmatpush1.msra.mxu0 0.0
    %281 = vmatprep.subr.mxu0 0.0
    %282 = vmatpush1.msra.mxu0 0.0
    %283 = vmatprep.subr.mxu0 0.0
    %284 = vmatpush1.msra.mxu0 0.0
    %285 = vmatprep.subr.mxu0 0.0
    %286 = vmatpush1.msra.mxu0 0.0
    %287 = vmatprep.subr.mxu0 0.0
    %288 = vmatpush1.msra.mxu0 0.0
    %289 = vmatprep.subr.mxu0 0.0
    %290 = vmatpush1.msra.mxu0 0.0
    %291 = vmatprep.subr.mxu0 0.0
    %292 = vmatpush1.msra.mxu0 0.0
    %293 = vmatprep.subr.mxu0 0.0
    %294 = vmatpush1.msra.mxu0 0.0
    %295 = vmatprep.subr.mxu0 0.0
    %296 = vmatpush1.msra.mxu0 0.0
    %297 = vmatprep.subr.mxu0 0.0
    %298 = vmatpush1.msra.mxu0 0.0
    %299 = vmatprep.subr.mxu0 0.0
    %300 = vmatpush1.msra.mxu0 0.0
    %301 = vmatprep.subr.mxu0 0.0
    %302 = vmatpush1.msra.mxu0 0.0
    %303 = vmatprep.subr.mxu0 0.0
    %304 = vmatpush1.msra.mxu0 0.0
    %305 = vmatprep.subr.mxu0 0.0
    %306 = vmatpush1.msra.mxu0 0.0
    %307 = vmatprep.mubr.f32.mxu0 0.0
    %308 = vmatmul.mubr.f32.gmra.mrb[0].mxu0 %v241
    %v309 = vpop.f32.mrb[0].mxu0
    %v310 = vadd.f32 %v237, %v309
    %v311 = vpop.f32.mrb[0].mxu0
    %312 = vdwg.mxu0
    %v313 = vld [vmem:[#allocation7] sm:$0xff]
    %v314 = vld [vmem:[#allocation7 + $0x8] sm:$0xff]
    %v315 = vld [vmem:[#allocation7 + $0x10] sm:$0xff]
    %v316 = vld [vmem:[#allocation7 + $0x18] sm:$0xff]
    %v317 = vld [vmem:[#allocation8] sm:$0x1]
    %v319 = vlaneseq
    %v320 = vshrl.u32 %v319, 7
    %v321 = vsub.s32 0, %v320
    %v322 = vrot.slane %v317, %v321
    %v325 = vsel %vm239, %v143, 0
    %327 = vmatprep.subr.mxu0 0.0
    %328 = vmatpush1.msra.mxu0 %v313
    %329 = vmatprep.subr.mxu0 0.0
    %330 = vmatpush1.msra.mxu0 %v314
    %331 = vmatprep.subr.mxu0 0.0
    %332 = vmatpush1.msra.mxu0 %v315
    %333 = vmatprep.subr.mxu0 0.0
    %334 = vmatpush1.msra.mxu0 %v316
    %335 = vmatprep.subr.mxu0 0.0
    %336 = vmatpush1.msra.mxu0 0.0
    %337 = vmatprep.subr.mxu0 0.0
    %338 = vmatpush1.msra.mxu0 0.0
    %339 = vmatprep.subr.mxu0 0.0
    %340 = vmatpush1.msra.mxu0 0.0
    %341 = vmatprep.subr.mxu0 0.0
    %342 = vmatpush1.msra.mxu0 0.0
    %343 = vmatprep.subr.mxu0 0.0
    %344 = vmatpush1.msra.mxu0 0.0
    %345 = vmatprep.subr.mxu0 0.0
    %346 = vmatpush1.msra.mxu0 0.0
    %347 = vmatprep.subr.mxu0 0.0
    %348 = vmatpush1.msra.mxu0 0.0
    %349 = vmatprep.subr.mxu0 0.0
    %350 = vmatpush1.msra.mxu0 0.0
    %351 = vmatprep.subr.mxu0 0.0
    %352 = vmatpush1.msra.mxu0 0.0
    %353 = vmatprep.subr.mxu0 0.0
    %354 = vmatpush1.msra.mxu0 0.0
    %355 = vmatprep.subr.mxu0 0.0
    %356 = vmatpush1.msra.mxu0 0.0
    %357 = vmatprep.subr.mxu0 0.0
    %358 = vmatpush1.msra.mxu0 0.0
    %359 = vmatprep.subr.mxu0 0.0
    %360 = vmatpush1.msra.mxu0 0.0
    %361 = vmatprep.subr.mxu0 0.0
    %362 = vmatpush1.msra.mxu0 0.0
    %363 = vmatprep.subr.mxu0 0.0
    %364 = vmatpush1.msra.mxu0 0.0
    %365 = vmatprep.subr.mxu0 0.0
    %366 = vmatpush1.msra.mxu0 0.0
    %367 = vmatprep.subr.mxu0 0.0
    %368 = vmatpush1.msra.mxu0 0.0
    %369 = vmatprep.subr.mxu0 0.0
    %370 = vmatpush1.msra.mxu0 0.0
    %371 = vmatprep.subr.mxu0 0.0
    %372 = vmatpush1.msra.mxu0 0.0
    %373 = vmatprep.subr.mxu0 0.0
    %374 = vmatpush1.msra.mxu0 0.0
    %375 = vmatprep.subr.mxu0 0.0
    %376 = vmatpush1.msra.mxu0 0.0
    %377 = vmatprep.subr.mxu0 0.0
    %378 = vmatpush1.msra.mxu0 0.0
    %379 = vmatprep.subr.mxu0 0.0
    %380 = vmatpush1.msra.mxu0 0.0
    %381 = vmatprep.subr.mxu0 0.0
    %382 = vmatpush1.msra.mxu0 0.0
    %383 = vmatprep.subr.mxu0 0.0
    %384 = vmatpush1.msra.mxu0 0.0
    %385 = vmatprep.subr.mxu0 0.0
    %386 = vmatpush1.msra.mxu0 0.0
    %387 = vmatprep.subr.mxu0 0.0
    %388 = vmatpush1.msra.mxu0 0.0
    %389 = vmatprep.subr.mxu0 0.0
    %390 = vmatpush1.msra.mxu0 0.0
    %391 = vmatprep.mubr.f32.mxu0 0.0
    %392 = vmatmul.mubr.f32.gmra.mrb[0].mxu0 %v325
    %v393 = vpop.f32.mrb[0].mxu0
    %v394 = vadd.f32 %v322, %v393
    %v395 = vpop.f32.mrb[0].mxu0
    %396 = vdwg.mxu0
    %v397 = vadd.f32 %v310, %v394
    %v398 = vxor.u32 %v397, 2147483648
    %v399 = vmul.f32 %v398, 1.442695
    %v400 = vpow.pop %v399
    %v401 = vadd.f32 %v400, 1.0
    %v402 = vrcp.pop %v401
    %v403 = vmul.f32 1.0, %v402
    %405 = vrot.lane.b32.xlu0 %v394, 64
    %v406 = vpop.permute.xlu0 %405
    %v408 = vmul.f32 %v403, %v406
    %410 = vrot.lane.b32.xlu0 %v408, 64
    %v411 = vpop.permute.xlu0 %410
    %v413 = vadd.f32 %v310, %v411
    %v414 = vtanh.pop %v413
    %v415 = vsub.f32 1.0, %v403
    %417 = vrot.lane.b32.xlu0 %v414, 96
    %v418 = vpop.permute.xlu0 %417
    %v420 = vmul.f32 %v415, %v418
    %421 = vrot.lane.b32.xlu0 %v143, 32
    %v422 = vpop.permute.xlu0 %421
    %v424 = vmul.f32 %v403, %v422
    %v425 = vadd.f32 %v420, %v424
    %427 = vrot.lane.b32.xlu0 %v425, 96
    %v428 = vpop.permute.xlu0 %427
    %430 = vst.msk [vmem:[#allocation16] sm:$0xff] %vm239, %v428
    %v431 = vsel %vm239, %v428, 0.0
    %432 = vadd.xlane.f32.xlu0 %v431
    %v433 = vpop.xlane.xlu0 %432
    %v434 = vmul.f32 %v425, %v425
    %436 = vrot.lane.b32.xlu0 %v434, 96
    %v437 = vpop.permute.xlu0 %436
    %v439 = vsel %vm239, %v437, 0.0
    %440 = vadd.xlane.f32.xlu0 %v439
    %v441 = vpop.xlane.xlu0 %440
    %v442 = vmul.f32 %v433, 0.03125
    %v443 = vmul.f32 %v441, 0.03125
    %v444 = vmul.f32 %v442, %v442
    %v445 = vsub.f32 %v443, %v444
    %v446 = vsub.f32 %v425, %v442
    %v447 = vadd.f32 %v445, 1e-05
    %v448 = vrsqrt.pop %v447
    %v449 = vmul.f32 %v446, %v448
    %v450 = vld [vmem:[#allocation10] sm:$0x1]
    %v452 = vlaneseq
    %v453 = vshrl.u32 %v452, 7
    %v454 = vsub.s32 0, %v453
    %v455 = vrot.slane %v450, %v454
    %456 = vrot.lane.b32.xlu0 %v455, 32
    %v457 = vpop.permute.xlu0 %456
    %v459 = vmul.f32 %v449, %v457
    %v460 = vld [vmem:[#allocation11] sm:$0x1]
    %v462 = vlaneseq
    %v463 = vshrl.u32 %v462, 7
    %v464 = vsub.s32 0, %v463
    %v465 = vrot.slane %v460, %v464
    %466 = vrot.lane.b32.xlu0 %v465, 32
    %v467 = vpop.permute.xlu0 %466
    %v469 = vadd.f32 %v459, %v467
    %v470 = vld [vmem:[#allocation13] sm:$0xff]
    %v471 = vld [vmem:[#allocation13 + $0x8] sm:$0xff]
    %v472 = vld [vmem:[#allocation13 + $0x10] sm:$0xff]
    %v473 = vld [vmem:[#allocation13 + $0x18] sm:$0xff]
    %v474 = vld [vmem:[#allocation14] sm:$0x1]
    %v476 = vlaneseq
    %v477 = vshrl.u32 %v476, 7
    %v478 = vsub.s32 0, %v477
    %v479 = vrot.slane %v474, %v478
    %482 = vrot.lane.b32.xlu0 %v469, 96
    %v483 = vpop.permute.xlu0 %482
    %v484 = vsel %vm239, %v483, 0
    %486 = vmatprep.subr.mxu0 0.0
    %487 = vmatpush1.msra.mxu0 %v470
    %488 = vmatprep.subr.mxu0 0.0
    %489 = vmatpush1.msra.mxu0 %v471
    %490 = vmatprep.subr.mxu0 0.0
    %491 = vmatpush1.msra.mxu0 %v472
    %492 = vmatprep.subr.mxu0 0.0
    %493 = vmatpush1.msra.mxu0 %v473
    %494 = vmatprep.subr.mxu0 0.0
    %495 = vmatpush1.msra.mxu0 0.0
    %496 = vmatprep.subr.mxu0 0.0
    %497 = vmatpush1.msra.mxu0 0.0
    %498 = vmatprep.subr.mxu0 0.0
    %499 = vmatpush1.msra.mxu0 0.0
    %500 = vmatprep.subr.mxu0 0.0
    %501 = vmatpush1.msra.mxu0 0.0
    %502 = vmatprep.subr.mxu0 0.0
    %503 = vmatpush1.msra.mxu0 0.0
    %504 = vmatprep.subr.mxu0 0.0
    %505 = vmatpush1.msra.mxu0 0.0
    %506 = vmatprep.subr.mxu0 0.0
    %507 = vmatpush1.msra.mxu0 0.0
    %508 = vmatprep.subr.mxu0 0.0
    %509 = vmatpush1.msra.mxu0 0.0
    %510 = vmatprep.subr.mxu0 0.0
    %511 = vmatpush1.msra.mxu0 0.0
    %512 = vmatprep.subr.mxu0 0.0
    %513 = vmatpush1.msra.mxu0 0.0
    %514 = vmatprep.subr.mxu0 0.0
    %515 = vmatpush1.msra.mxu0 0.0
    %516 = vmatprep.subr.mxu0 0.0
    %517 = vmatpush1.msra.mxu0 0.0
    %518 = vmatprep.subr.mxu0 0.0
    %519 = vmatpush1.msra.mxu0 0.0
    %520 = vmatprep.subr.mxu0 0.0
    %521 = vmatpush1.msra.mxu0 0.0
    %522 = vmatprep.subr.mxu0 0.0
    %523 = vmatpush1.msra.mxu0 0.0
    %524 = vmatprep.subr.mxu0 0.0
    %525 = vmatpush1.msra.mxu0 0.0
    %526 = vmatprep.subr.mxu0 0.0
    %527 = vmatpush1.msra.mxu0 0.0
    %528 = vmatprep.subr.mxu0 0.0
    %529 = vmatpush1.msra.mxu0 0.0
    %530 = vmatprep.subr.mxu0 0.0
    %531 = vmatpush1.msra.mxu0 0.0
    %532 = vmatprep.subr.mxu0 0.0
    %533 = vmatpush1.msra.mxu0 0.0
    %534 = vmatprep.subr.mxu0 0.0
    %535 = vmatpush1.msra.mxu0 0.0
    %536 = vmatprep.subr.mxu0 0.0
    %537 = vmatpush1.msra.mxu0 0.0
    %538 = vmatprep.subr.mxu0 0.0
    %539 = vmatpush1.msra.mxu0 0.0
    %540 = vmatprep.subr.mxu0 0.0
    %541 = vmatpush1.msra.mxu0 0.0
    %542 = vmatprep.subr.mxu0 0.0
    %543 = vmatpush1.msra.mxu0 0.0
    %544 = vmatprep.subr.mxu0 0.0
    %545 = vmatpush1.msra.mxu0 0.0
    %546 = vmatprep.subr.mxu0 0.0
    %547 = vmatpush1.msra.mxu0 0.0
    %548 = vmatprep.subr.mxu0 0.0
    %549 = vmatpush1.msra.mxu0 0.0
    %550 = vmatprep.mubr.f32.mxu0 0.0
    %551 = vmatmul.mubr.f32.gmra.mrb[0].mxu0 %v484
    %v552 = vpop.f32.mrb[0].mxu0
    %v553 = vadd.f32 %v479, %v552
    %v554 = vpop.f32.mrb[0].mxu0
    %555 = vdwg.mxu0
    %556 = vst [vmem:[#allocation17] sm:$0xff] %v553
    // Predicated region
    $region82: #{tpu_custom_call.1} parent=1 // pred_check
      _
    $region83: #{tpu_custom_call.1} parent=1 // pred_check_branch
      %558 = sbr.rel (0) target = $region85
    $region84: #{tpu_custom_call.1} parent=1 // pred_region
      %s560 = ssub.s32 128, 128
      %561 = vsyncadd [#allocation4], %s560
      %s563 = sshll.u32 [#allocation16], 4
      %s564 = int_to_ptr.vmem [resolvable:$true] %s563
      %566 = dma.vmem_to_hbm [thread:$0]  %s564, 128, %s12, [#allocation4]
    $region85: #{tpu_custom_call.1} parent=1 // pred_fallthru
      _
    // Predicated region
    $region86: #{tpu_custom_call.1} parent=1 // pred_check
      _
    $region87: #{tpu_custom_call.1} parent=1 // pred_check_branch
      %568 = sbr.rel (0) target = $region89
    $region88: #{tpu_custom_call.1} parent=1 // pred_region
      %s570 = ssub.s32 128, 128
      %571 = vsyncadd [#allocation18], %s570
      %s573 = sshll.u32 [#allocation17], 4
      %s574 = int_to_ptr.vmem [resolvable:$true] %s573
      %576 = dma.vmem_to_hbm [thread:$0]  %s574, 128, %s13, [#allocation18]
    $region89: #{tpu_custom_call.1} parent=1 // pred_fallthru
      _
    // Predicated region
    $region90: #{tpu_custom_call.1} parent=1 // pred_check
      _
    $region91: #{tpu_custom_call.1} parent=1 // pred_check_branch
      %578 = sbr.rel (0) target = $region93
    $region92: #{tpu_custom_call.1} parent=1 // pred_region
      %579 = dma.done [#allocation4], 128
    $region93: #{tpu_custom_call.1} parent=1 // pred_fallthru
      _
    // Predicated region
    $region94: #{tpu_custom_call.1} parent=1 // pred_check
      _
    $region95: #{tpu_custom_call.1} parent=1 // pred_check_branch
      %581 = sbr.rel (0) target = $region97
    $region96: #{tpu_custom_call.1} parent=1 // pred_region
      %582 = dma.done [#allocation18], 128
    $region97: #{tpu_custom_call.1} parent=1 // pred_fallthru
      _
    %583 = vsyncpa [#allocation3], 1
    %584 = vsyncpa [#allocation6], 1
    %585 = vsyncpa [#allocation9], 1
    %586 = vsyncpa [#allocation12], 1
    %587 = vsyncpa [#allocation15], 1
    %588 = vsyncpa [#allocation4], 1
    %589 = vsyncpa [#allocation18], 1

// kernel: tpu_custom_call.1
$region0: #{tpu_custom_call.1}
  #allocation0 [shape = 'u32[]', space=smem, size = 0x4, offset = 0x4, fixed_abs, tag = 'smem constant byte address 0x4 - core index']
  #allocation1 [shape = 'u32[144,128]{1,0:T(1,128)}', space=vmem, size = 0x12000, scoped, tag = 'internal scratch']
  %s0 = inlined_call_operand.vmem [shape: f32[8,16], index: 0, kind: input, shape index: {}]
  %s1 = inlined_call_operand.hbm [shape: f32[8,32], index: 1, kind: input, shape index: {}, may-alias: {1,12}]
  %s2 = inlined_call_operand.vmem [shape: f32[16,32], index: 2, kind: input, shape index: {}]
  %s3 = inlined_call_operand.vmem [shape: f32[1,32], index: 3, kind: input, shape index: {}]
  %s4 = inlined_call_operand.vmem [shape: f32[32,96], index: 4, kind: input, shape index: {}]
  %s5 = inlined_call_operand.hbm [shape: f32[1,96], index: 5, kind: input, shape index: {}]
  %s6 = inlined_call_operand.hbm [shape: f32[32,96], index: 6, kind: input, shape index: {}]
  %s7 = inlined_call_operand.hbm [shape: f32[1,96], index: 7, kind: input, shape index: {}]
  %s8 = inlined_call_operand.hbm [shape: f32[1,32], index: 8, kind: input, shape index: {}]
  %s9 = inlined_call_operand.hbm [shape: f32[1,32], index: 9, kind: input, shape index: {}]
  %s10 = inlined_call_operand.hbm [shape: f32[32,128], index: 10, kind: input, shape index: {}]
  %s11 = inlined_call_operand.hbm [shape: f32[1,128], index: 11, kind: input, shape index: {}]
  %s12 = inlined_call_operand.hbm [shape: f32[8,32], index: 12, kind: output, shape index: {0}, may-alias: {1,12}]
  %s13 = inlined_call_operand.hbm [shape: f32[8,128], index: 13, kind: output, shape index: {1}]
  %14 = xla_tuple %s12, %s13
  %s15 = sld [smem:[#allocation0]]
  $region98: #{tpu_custom_call.1} parent=0
    _
  %s17 = ssub.s32 1, %s15
  %s18 = scalar_select 0, %s17, %s15
  $region1: #{tpu_custom_call.1} parent=0
    #allocation2 [shape = 'u8[4096]{0}', space=vmem, size = 0x1000, scoped, tag = 'input window, operand 1, single buffered']
    #allocation3 [shape = 's32[1]{0}', space=sflag, size = 0x4, scoped, tag = 'scoped memory for tpu_custom_call.1']
    #allocation4 [shape = 's32[1]{0}', space=sflag, size = 0x4, scoped, tag = 'scoped memory for tpu_custom_call.1']
    #allocation5 [shape = 'u8[512]{0}', space=vmem, size = 0x400, scoped, tag = 'input window, operand 5, single buffered']
    #allocation6 [shape = 's32[1]{0}', space=sflag, size = 0x4, scoped, tag = 'scoped memory for tpu_custom_call.1']
    #allocation7 [shape = 'u8[16384]{0}', space=vmem, size = 0x4000, scoped, tag = 'input window, operand 6, single buffered']
    #allocation8 [shape = 'u8[512]{0}', space=vmem, size = 0x400, scoped, tag = 'input window, operand 7, single buffered']
    #allocation9 [shape = 's32[1]{0}', space=sflag, size = 0x4, scoped, tag = 'scoped memory for tpu_custom_call.1']
    #allocation10 [shape = 'u8[512]{0}', space=vmem, size = 0x400, scoped, tag = 'input window, operand 8, single buffered']
    #allocation11 [shape = 'u8[512]{0}', space=vmem, size = 0x400, scoped, tag = 'input window, operand 9, single buffered']
    #allocation12 [shape = 's32[1]{0}', space=sflag, size = 0x4, scoped, tag = 'scoped memory for tpu_custom_call.1']
    #allocation13 [shape = 'u8[16384]{0}', space=vmem, size = 0x4000, scoped, tag = 'input window, operand 10, single buffered']
    #allocation14 [shape = 'u8[512]{0}', space=vmem, size = 0x400, scoped, tag = 'input window, operand 11, single buffered']
    #allocation15 [shape = 's32[1]{0}', space=sflag, size = 0x4, scoped, tag = 'scoped memory for tpu_custom_call.1']
    #allocation16 [shape = 'u8[4096]{0}', space=vmem, size = 0x1000, scoped, tag = 'output window, operand 0, single buffered']
    #allocation17 [shape = 'u8[4096]{0}', space=vmem, size = 0x1000, scoped, tag = 'output window, operand 1, single buffered']
    #allocation18 [shape = 's32[1]{0}', space=sflag, size = 0x4, scoped, tag = 'scoped memory for tpu_custom_call.1']
    %19 = vsyncpa [#allocation3], 0
    %20 = vsyncpa [#allocation6], 0
    %21 = vsyncpa [#allocation9], 0
    %22 = vsyncpa [#allocation12], 0
    %23 = vsyncpa [#allocation15], 0
    %24 = vsyncpa [#allocation4], 0
    %25 = vsyncpa [#allocation18], 0
    // Predicated region
    $region2: #{tpu_custom_call.1} parent=1 // pred_check
      _
    $region3: #{tpu_custom_call.1} parent=1 // pred_check_branch
      %27 = sbr.rel (0) target = $region5
    $region4: #{tpu_custom_call.1} parent=1 // pred_region
      _
    $region5: #{tpu_custom_call.1} parent=1 // pred_fallthru
      _
    // Predicated region
    $region6: #{tpu_custom_call.1} parent=1 // pred_check
      _
    $region7: #{tpu_custom_call.1} parent=1 // pred_check_branch
      %29 = sbr.rel (0) target = $region9
    $region8: #{tpu_custom_call.1} parent=1 // pred_region
      %s31 = ssub.s32 128, 128
      %32 = vsyncadd [#allocation3], %s31
      %s34 = sshll.u32 [#allocation2], 4
      %s35 = int_to_ptr.vmem [resolvable:$true] %s34
      %37 = dma.hbm_to_vmem [thread:$0]  %s1, 128, %s35, [#allocation3]
    $region9: #{tpu_custom_call.1} parent=1 // pred_fallthru
      _
    // Predicated region
    $region10: #{tpu_custom_call.1} parent=1 // pred_check
      _
    $region11: #{tpu_custom_call.1} parent=1 // pred_check_branch
      %39 = sbr.rel (0) target = $region13
    $region12: #{tpu_custom_call.1} parent=1 // pred_region
      _
    $region13: #{tpu_custom_call.1} parent=1 // pred_fallthru
      _
    // Predicated region
    $region14: #{tpu_custom_call.1} parent=1 // pred_check
      _
    $region15: #{tpu_custom_call.1} parent=1 // pred_check_branch
      %41 = sbr.rel (0) target = $region17
    $region16: #{tpu_custom_call.1} parent=1 // pred_region
      _
    $region17: #{tpu_custom_call.1} parent=1 // pred_fallthru
      _
    // Predicated region
    $region18: #{tpu_custom_call.1} parent=1 // pred_check
      _
    $region19: #{tpu_custom_call.1} parent=1 // pred_check_branch
      %43 = sbr.rel (0) target = $region21
    $region20: #{tpu_custom_call.1} parent=1 // pred_region
      _
    $region21: #{tpu_custom_call.1} parent=1 // pred_fallthru
      _
    // Predicated region
    $region22: #{tpu_custom_call.1} parent=1 // pred_check
      _
    $region23: #{tpu_custom_call.1} parent=1 // pred_check_branch
      %45 = sbr.rel (0) target = $region25
    $region24: #{tpu_custom_call.1} parent=1 // pred_region
      %s47 = ssub.s32 16, 16
      %48 = vsyncadd [#allocation6], %s47
      %s50 = sshll.u32 [#allocation5], 4
      %s51 = int_to_ptr.vmem [resolvable:$true] %s50
      %53 = dma.hbm_to_vmem [thread:$0]  %s5, 16, %s51, [#allocation6]
    $region25: #{tpu_custom_call.1} parent=1 // pred_fallthru
      _
    // Predicated region
    $region26: #{tpu_custom_call.1} parent=1 // pred_check
      _
    $region27: #{tpu_custom_call.1} parent=1 // pred_check_branch
      %55 = sbr.rel (0) target = $region29
    $region28: #{tpu_custom_call.1} parent=1 // pred_region
      %s57 = ssub.s32 512, 512
      %58 = vsyncadd [#allocation6], %s57
      %s59 = sshll.u32 [#allocation7], 4
      %s60 = int_to_ptr.vmem [resolvable:$true] %s59
      %65 = dma.hbm_to_vmem [thread:$0]  %s6, 512, %s60, [#allocation6], 128, 128, 8
    $region29: #{tpu_custom_call.1} parent=1 // pred_fallthru
      _
    // Predicated region
    $region30: #{tpu_custom_call.1} parent=1 // pred_check
      _
    $region31: #{tpu_custom_call.1} parent=1 // pred_check_branch
      %67 = sbr.rel (0) target = $region33
    $region32: #{tpu_custom_call.1} parent=1 // pred_region
      %s69 = ssub.s32 16, 16
      %70 = vsyncadd [#allocation9], %s69
      %s72 = sshll.u32 [#allocation8], 4
      %s73 = int_to_ptr.vmem [resolvable:$true] %s72
      %75 = dma.hbm_to_vmem [thread:$0]  %s7, 16, %s73, [#allocation9]
    $region33: #{tpu_custom_call.1} parent=1 // pred_fallthru
      _
    // Predicated region
    $region34: #{tpu_custom_call.1} parent=1 // pred_check
      _
    $region35: #{tpu_custom_call.1} parent=1 // pred_check_branch
      %77 = sbr.rel (0) target = $region37
    $region36: #{tpu_custom_call.1} parent=1 // pred_region
      %s79 = ssub.s32 16, 16
      %80 = vsyncadd [#allocation9], %s79
      %s82 = sshll.u32 [#allocation10], 4
      %s83 = int_to_ptr.vmem [resolvable:$true] %s82
      %85 = dma.hbm_to_vmem [thread:$0]  %s8, 16, %s83, [#allocation9]
    $region37: #{tpu_custom_call.1} parent=1 // pred_fallthru
      _
    // Predicated region
    $region38: #{tpu_custom_call.1} parent=1 // pred_check
      _
    $region39: #{tpu_custom_call.1} parent=1 // pred_check_branch
      %87 = sbr.rel (0) target = $region41
    $region40: #{tpu_custom_call.1} parent=1 // pred_region
      %s89 = ssub.s32 16, 16
      %90 = vsyncadd [#allocation12], %s89
      %s92 = sshll.u32 [#allocation11], 4
      %s93 = int_to_ptr.vmem [resolvable:$true] %s92
      %95 = dma.hbm_to_vmem [thread:$0]  %s9, 16, %s93, [#allocation12]
    $region41: #{tpu_custom_call.1} parent=1 // pred_fallthru
      _
    // Predicated region
    $region42: #{tpu_custom_call.1} parent=1 // pred_check
      _
    $region43: #{tpu_custom_call.1} parent=1 // pred_check_branch
      %97 = sbr.rel (0) target = $region45
    $region44: #{tpu_custom_call.1} parent=1 // pred_region
      %s99 = ssub.s32 512, 512
      %100 = vsyncadd [#allocation12], %s99
      %s101 = sshll.u32 [#allocation13], 4
      %s102 = int_to_ptr.vmem [resolvable:$true] %s101
      %107 = dma.hbm_to_vmem [thread:$0]  %s10, 512, %s102, [#allocation12], 128, 128, 8
    $region45: #{tpu_custom_call.1} parent=1 // pred_fallthru
      _
    // Predicated region
    $region46: #{tpu_custom_call.1} parent=1 // pred_check
      _
    $region47: #{tpu_custom_call.1} parent=1 // pred_check_branch
      %109 = sbr.rel (0) target = $region49
    $region48: #{tpu_custom_call.1} parent=1 // pred_region
      %s111 = ssub.s32 16, 16
      %112 = vsyncadd [#allocation15], %s111
      %s114 = sshll.u32 [#allocation14], 4
      %s115 = int_to_ptr.vmem [resolvable:$true] %s114
      %117 = dma.hbm_to_vmem [thread:$0]  %s11, 16, %s115, [#allocation15]
    $region49: #{tpu_custom_call.1} parent=1 // pred_fallthru
      _
    // Predicated region
    $region50: #{tpu_custom_call.1} parent=1 // pred_check
      _
    $region51: #{tpu_custom_call.1} parent=1 // pred_check_branch
      %119 = sbr.rel (0) target = $region53
    $region52: #{tpu_custom_call.1} parent=1 // pred_region
      %120 = dma.done [#allocation3], 128
    $region53: #{tpu_custom_call.1} parent=1 // pred_fallthru
      _
    // Predicated region
    $region54: #{tpu_custom_call.1} parent=1 // pred_check
      _
    $region55: #{tpu_custom_call.1} parent=1 // pred_check_branch
      %122 = sbr.rel (0) target = $region57
    $region56: #{tpu_custom_call.1} parent=1 // pred_region
      %123 = dma.done [#allocation6], 16
    $region57: #{tpu_custom_call.1} parent=1 // pred_fallthru
      _
    // Predicated region
    $region58: #{tpu_custom_call.1} parent=1 // pred_check
      _
    $region59: #{tpu_custom_call.1} parent=1 // pred_check_branch
      %125 = sbr.rel (0) target = $region61
    $region60: #{tpu_custom_call.1} parent=1 // pred_region
      %126 = dma.done [#allocation6], 512
    $region61: #{tpu_custom_call.1} parent=1 // pred_fallthru
      _
    // Predicated region
    $region62: #{tpu_custom_call.1} parent=1 // pred_check
      _
    $region63: #{tpu_custom_call.1} parent=1 // pred_check_branch
      %128 = sbr.rel (0) target = $region65
    $region64: #{tpu_custom_call.1} parent=1 // pred_region
      %129 = dma.done [#allocation9], 16
    $region65: #{tpu_custom_call.1} parent=1 // pred_fallthru
      _
    // Predicated region
    $region66: #{tpu_custom_call.1} parent=1 // pred_check
      _
    $region67: #{tpu_custom_call.1} parent=1 // pred_check_branch
      %131 = sbr.rel (0) target = $region69
    $region68: #{tpu_custom_call.1} parent=1 // pred_region
      %132 = dma.done [#allocation9], 16
    $region69: #{tpu_custom_call.1} parent=1 // pred_fallthru
      _
    // Predicated region
    $region70: #{tpu_custom_call.1} parent=1 // pred_check
      _
    $region71: #{tpu_custom_call.1} parent=1 // pred_check_branch
      %134 = sbr.rel (0) target = $region73
    $region72: #{tpu_custom_call.1} parent=1 // pred_region
      %135 = dma.done [#allocation12], 16
    $region73: #{tpu_custom_call.1} parent=1 // pred_fallthru
      _
    // Predicated region
    $region74: #{tpu_custom_call.1} parent=1 // pred_check
      _
    $region75: #{tpu_custom_call.1} parent=1 // pred_check_branch
      %137 = sbr.rel (0) target = $region77
    $region76: #{tpu_custom_call.1} parent=1 // pred_region
      %138 = dma.done [#allocation12], 512
    $region77: #{tpu_custom_call.1} parent=1 // pred_fallthru
      _
    // Predicated region
    $region78: #{tpu_custom_call.1} parent=1 // pred_check
      _
    $region79: #{tpu_custom_call.1} parent=1 // pred_check_branch
      %140 = sbr.rel (0) target = $region81
    $region80: #{tpu_custom_call.1} parent=1 // pred_region
      %141 = dma.done [#allocation15], 16
    $region81: #{tpu_custom_call.1} parent=1 // pred_fallthru
      _
    %v142 = vld [vmem:[%s0] sm:$0xff]
    %v143 = vld [vmem:[#allocation2] sm:$0xff]
    %v144 = vld [vmem:[%s2] sm:$0xff]
    %v145 = vld [vmem:[%s2 + $0x8] sm:$0xff]
    %v146 = vld [vmem:[%s3] sm:$0x1]
    %v148 = vlaneseq
    %v149 = vshrl.u32 %v148, 7
    %v150 = vsub.s32 0, %v149
    %v151 = vrot.slane %v146, %v150
    %vm153 = vcmask 130048
    %v155 = vsel %vm153, %v142, 0
    %157 = vmatprep.subr.mxu0 0.0
    %158 = vmatpush1.msra.mxu0 %v144
    %159 = vmatprep.subr.mxu0 0.0
    %160 = vmatpush1.msra.mxu0 %v145
    %161 = vmatprep.subr.mxu0 0.0
    %162 = vmatpush1.msra.mxu0 0.0
    %163 = vmatprep.subr.mxu0 0.0
    %164 = vmatpush1.msra.mxu0 0.0
    %165 = vmatprep.subr.mxu0 0.0
    %166 = vmatpush1.msra.mxu0 0.0
    %167 = vmatprep.subr.mxu0 0.0
    %168 = vmatpush1.msra.mxu0 0.0
    %169 = vmatprep.subr.mxu0 0.0
    %170 = vmatpush1.msra.mxu0 0.0
    %171 = vmatprep.subr.mxu0 0.0
    %172 = vmatpush1.msra.mxu0 0.0
    %173 = vmatprep.subr.mxu0 0.0
    %174 = vmatpush1.msra.mxu0 0.0
    %175 = vmatprep.subr.mxu0 0.0
    %176 = vmatpush1.msra.mxu0 0.0
    %177 = vmatprep.subr.mxu0 0.0
    %178 = vmatpush1.msra.mxu0 0.0
    %179 = vmatprep.subr.mxu0 0.0
    %180 = vmatpush1.msra.mxu0 0.0
    %181 = vmatprep.subr.mxu0 0.0
    %182 = vmatpush1.msra.mxu0 0.0
    %183 = vmatprep.subr.mxu0 0.0
    %184 = vmatpush1.msra.mxu0 0.0
    %185 = vmatprep.subr.mxu0 0.0
    %186 = vmatpush1.msra.mxu0 0.0
    %187 = vmatprep.subr.mxu0 0.0
    %188 = vmatpush1.msra.mxu0 0.0
    %189 = vmatprep.subr.mxu0 0.0
    %190 = vmatpush1.msra.mxu0 0.0
    %191 = vmatprep.subr.mxu0 0.0
    %192 = vmatpush1.msra.mxu0 0.0
    %193 = vmatprep.subr.mxu0 0.0
    %194 = vmatpush1.msra.mxu0 0.0
    %195 = vmatprep.subr.mxu0 0.0
    %196 = vmatpush1.msra.mxu0 0.0
    %197 = vmatprep.subr.mxu0 0.0
    %198 = vmatpush1.msra.mxu0 0.0
    %199 = vmatprep.subr.mxu0 0.0
    %200 = vmatpush1.msra.mxu0 0.0
    %201 = vmatprep.subr.mxu0 0.0
    %202 = vmatpush1.msra.mxu0 0.0
    %203 = vmatprep.subr.mxu0 0.0
    %204 = vmatpush1.msra.mxu0 0.0
    %205 = vmatprep.subr.mxu0 0.0
    %206 = vmatpush1.msra.mxu0 0.0
    %207 = vmatprep.subr.mxu0 0.0
    %208 = vmatpush1.msra.mxu0 0.0
    %209 = vmatprep.subr.mxu0 0.0
    %210 = vmatpush1.msra.mxu0 0.0
    %211 = vmatprep.subr.mxu0 0.0
    %212 = vmatpush1.msra.mxu0 0.0
    %213 = vmatprep.subr.mxu0 0.0
    %214 = vmatpush1.msra.mxu0 0.0
    %215 = vmatprep.subr.mxu0 0.0
    %216 = vmatpush1.msra.mxu0 0.0
    %217 = vmatprep.subr.mxu0 0.0
    %218 = vmatpush1.msra.mxu0 0.0
    %219 = vmatprep.subr.mxu0 0.0
    %220 = vmatpush1.msra.mxu0 0.0
    %221 = vmatprep.mubr.f32.mxu0 0.0
    %222 = vmatmul.mubr.f32.gmra.mrb[0].mxu0 %v155
    %v223 = vpop.f32.mrb[0].mxu0
    %v224 = vadd.f32 %v151, %v223
    %v225 = vpop.f32.mrb[0].mxu0
    %226 = vdwg.mxu0
    %v227 = vmax.f32 %v224, 0.0
    %v228 = vld [vmem:[%s4] sm:$0xff]
    %v229 = vld [vmem:[%s4 + $0x8] sm:$0xff]
    %v230 = vld [vmem:[%s4 + $0x10] sm:$0xff]
    %v231 = vld [vmem:[%s4 + $0x18] sm:$0xff]
    %v232 = vld [vmem:[#allocation5] sm:$0x1]
    %v234 = vlaneseq
    %v235 = vshrl.u32 %v234, 7
    %v236 = vsub.s32 0, %v235
    %v237 = vrot.slane %v232, %v236
    %vm239 = vcmask 261120
    %v241 = vsel %vm239, %v227, 0
    %243 = vmatprep.subr.mxu0 0.0
    %244 = vmatpush1.msra.mxu0 %v228
    %245 = vmatprep.subr.mxu0 0.0
    %246 = vmatpush1.msra.mxu0 %v229
    %247 = vmatprep.subr.mxu0 0.0
    %248 = vmatpush1.msra.mxu0 %v230
    %249 = vmatprep.subr.mxu0 0.0
    %250 = vmatpush1.msra.mxu0 %v231
    %251 = vmatprep.subr.mxu0 0.0
    %252 = vmatpush1.msra.mxu0 0.0
    %253 = vmatprep.subr.mxu0 0.0
    %254 = vmatpush1.msra.mxu0 0.0
    %255 = vmatprep.subr.mxu0 0.0
    %256 = vmatpush1.msra.mxu0 0.0
    %257 = vmatprep.subr.mxu0 0.0
    %258 = vmatpush1.msra.mxu0 0.0
    %259 = vmatprep.subr.mxu0 0.0
    %260 = vmatpush1.msra.mxu0 0.0
    %261 = vmatprep.subr.mxu0 0.0
    %262 = vmatpush1.msra.mxu0 0.0
    %263 = vmatprep.subr.mxu0 0.0
    %264 = vmatpush1.msra.mxu0 0.0
    %265 = vmatprep.subr.mxu0 0.0
    %266 = vmatpush1.msra.mxu0 0.0
    %267 = vmatprep.subr.mxu0 0.0
    %268 = vmatpush1.msra.mxu0 0.0
    %269 = vmatprep.subr.mxu0 0.0
    %270 = vmatpush1.msra.mxu0 0.0
    %271 = vmatprep.subr.mxu0 0.0
    %272 = vmatpush1.msra.mxu0 0.0
    %273 = vmatprep.subr.mxu0 0.0
    %274 = vmatpush1.msra.mxu0 0.0
    %275 = vmatprep.subr.mxu0 0.0
    %276 = vmatpush1.msra.mxu0 0.0
    %277 = vmatprep.subr.mxu0 0.0
    %278 = vmatpush1.msra.mxu0 0.0
    %279 = vmatprep.subr.mxu0 0.0
    %280 = vmatpush1.msra.mxu0 0.0
    %281 = vmatprep.subr.mxu0 0.0
    %282 = vmatpush1.msra.mxu0 0.0
    %283 = vmatprep.subr.mxu0 0.0
    %284 = vmatpush1.msra.mxu0 0.0
    %285 = vmatprep.subr.mxu0 0.0
    %286 = vmatpush1.msra.mxu0 0.0
    %287 = vmatprep.subr.mxu0 0.0
    %288 = vmatpush1.msra.mxu0 0.0
    %289 = vmatprep.subr.mxu0 0.0
    %290 = vmatpush1.msra.mxu0 0.0
    %291 = vmatprep.subr.mxu0 0.0
    %292 = vmatpush1.msra.mxu0 0.0
    %293 = vmatprep.subr.mxu0 0.0
    %294 = vmatpush1.msra.mxu0 0.0
    %295 = vmatprep.subr.mxu0 0.0
    %296 = vmatpush1.msra.mxu0 0.0
    %297 = vmatprep.subr.mxu0 0.0
    %298 = vmatpush1.msra.mxu0 0.0
    %299 = vmatprep.subr.mxu0 0.0
    %300 = vmatpush1.msra.mxu0 0.0
    %301 = vmatprep.subr.mxu0 0.0
    %302 = vmatpush1.msra.mxu0 0.0
    %303 = vmatprep.subr.mxu0 0.0
    %304 = vmatpush1.msra.mxu0 0.0
    %305 = vmatprep.subr.mxu0 0.0
    %306 = vmatpush1.msra.mxu0 0.0
    %307 = vmatprep.mubr.f32.mxu0 0.0
    %308 = vmatmul.mubr.f32.gmra.mrb[0].mxu0 %v241
    %v309 = vpop.f32.mrb[0].mxu0
    %v310 = vadd.f32 %v237, %v309
    %v311 = vpop.f32.mrb[0].mxu0
    %312 = vdwg.mxu0
    %v313 = vld [vmem:[#allocation7] sm:$0xff]
    %v314 = vld [vmem:[#allocation7 + $0x8] sm:$0xff]
    %v315 = vld [vmem:[#allocation7 + $0x10] sm:$0xff]
    %v316 = vld [vmem:[#allocation7 + $0x18] sm:$0xff]
    %v317 = vld [vmem:[#allocation8] sm:$0x1]
    %v319 = vlaneseq
    %v320 = vshrl.u32 %v319, 7
    %v321 = vsub.s32 0, %v320
    %v322 = vrot.slane %v317, %v321
    %v325 = vsel %vm239, %v143, 0
    %327 = vmatprep.subr.mxu0 0.0
    %328 = vmatpush1.msra.mxu0 %v313
    %329 = vmatprep.subr.mxu0 0.0
    %330 = vmatpush1.msra.mxu0 %v314
    %331 = vmatprep.subr.mxu0 0.0
    %332 = vmatpush1.msra.mxu0 %v315
    %333 = vmatprep.subr.mxu0 0.0
    %334 = vmatpush1.msra.mxu0 %v316
    %335 = vmatprep.subr.mxu0 0.0
    %336 = vmatpush1.msra.mxu0 0.0
    %337 = vmatprep.subr.mxu0 0.0
    %338 = vmatpush1.msra.mxu0 0.0
    %339 = vmatprep.subr.mxu0 0.0
    %340 = vmatpush1.msra.mxu0 0.0
    %341 = vmatprep.subr.mxu0 0.0
    %342 = vmatpush1.msra.mxu0 0.0
    %343 = vmatprep.subr.mxu0 0.0
    %344 = vmatpush1.msra.mxu0 0.0
    %345 = vmatprep.subr.mxu0 0.0
    %346 = vmatpush1.msra.mxu0 0.0
    %347 = vmatprep.subr.mxu0 0.0
    %348 = vmatpush1.msra.mxu0 0.0
    %349 = vmatprep.subr.mxu0 0.0
    %350 = vmatpush1.msra.mxu0 0.0
    %351 = vmatprep.subr.mxu0 0.0
    %352 = vmatpush1.msra.mxu0 0.0
    %353 = vmatprep.subr.mxu0 0.0
    %354 = vmatpush1.msra.mxu0 0.0
    %355 = vmatprep.subr.mxu0 0.0
    %356 = vmatpush1.msra.mxu0 0.0
    %357 = vmatprep.subr.mxu0 0.0
    %358 = vmatpush1.msra.mxu0 0.0
    %359 = vmatprep.subr.mxu0 0.0
    %360 = vmatpush1.msra.mxu0 0.0
    %361 = vmatprep.subr.mxu0 0.0
    %362 = vmatpush1.msra.mxu0 0.0
    %363 = vmatprep.subr.mxu0 0.0
    %364 = vmatpush1.msra.mxu0 0.0
    %365 = vmatprep.subr.mxu0 0.0
    %366 = vmatpush1.msra.mxu0 0.0
    %367 = vmatprep.subr.mxu0 0.0
    %368 = vmatpush1.msra.mxu0 0.0
    %369 = vmatprep.subr.mxu0 0.0
    %370 = vmatpush1.msra.mxu0 0.0
    %371 = vmatprep.subr.mxu0 0.0
    %372 = vmatpush1.msra.mxu0 0.0
    %373 = vmatprep.subr.mxu0 0.0
    %374 = vmatpush1.msra.mxu0 0.0
    %375 = vmatprep.subr.mxu0 0.0
    %376 = vmatpush1.msra.mxu0 0.0
    %377 = vmatprep.subr.mxu0 0.0
    %378 = vmatpush1.msra.mxu0 0.0
    %379 = vmatprep.subr.mxu0 0.0
    %380 = vmatpush1.msra.mxu0 0.0
    %381 = vmatprep.subr.mxu0 0.0
    %382 = vmatpush1.msra.mxu0 0.0
    %383 = vmatprep.subr.mxu0 0.0
    %384 = vmatpush1.msra.mxu0 0.0
    %385 = vmatprep.subr.mxu0 0.0
    %386 = vmatpush1.msra.mxu0 0.0
    %387 = vmatprep.subr.mxu0 0.0
    %388 = vmatpush1.msra.mxu0 0.0
    %389 = vmatprep.subr.mxu0 0.0
    %390 = vmatpush1.msra.mxu0 0.0
    %391 = vmatprep.mubr.f32.mxu0 0.0
    %392 = vmatmul.mubr.f32.gmra.mrb[0].mxu0 %v325
    %v393 = vpop.f32.mrb[0].mxu0
    %v394 = vadd.f32 %v322, %v393
    %v395 = vpop.f32.mrb[0].mxu0
    %396 = vdwg.mxu0
    %v397 = vadd.f32 %v310, %v394
    %v398 = vxor.u32 %v397, 2147483648
    %v399 = vmul.f32 %v398, 1.442695
    %v400 = vpow.pop %v399
    %v401 = vadd.f32 %v400, 1.0
    %v402 = vrcp.pop %v401
    %v403 = vmul.f32 1.0, %v402
    %405 = vrot.lane.b32.xlu0 %v394, 64
    %v406 = vpop.permute.xlu0 %405
    %v408 = vmul.f32 %v403, %v406
    %410 = vrot.lane.b32.xlu0 %v408, 64
    %v411 = vpop.permute.xlu0 %410
    %v413 = vadd.f32 %v310, %v411
    %v414 = vtanh.pop %v413
    %v415 = vsub.f32 1.0, %v403
    %417 = vrot.lane.b32.xlu0 %v414, 96
    %v418 = vpop.permute.xlu0 %417
    %v420 = vmul.f32 %v415, %v418
    %421 = vrot.lane.b32.xlu0 %v143, 32
    %v422 = vpop.permute.xlu0 %421
    %v424 = vmul.f32 %v403, %v422
    %v425 = vadd.f32 %v420, %v424
    %427 = vrot.lane.b32.xlu0 %v425, 96
    %v428 = vpop.permute.xlu0 %427
    %430 = vst.msk [vmem:[#allocation16] sm:$0xff] %vm239, %v428
    %v431 = vsel %vm239, %v428, 0.0
    %432 = vadd.xlane.f32.xlu0 %v431
    %v433 = vpop.xlane.xlu0 %432
    %v434 = vmul.f32 %v425, %v425
    %436 = vrot.lane.b32.xlu0 %v434, 96
    %v437 = vpop.permute.xlu0 %436
    %v439 = vsel %vm239, %v437, 0.0
    %440 = vadd.xlane.f32.xlu0 %v439
    %v441 = vpop.xlane.xlu0 %440
    %v442 = vmul.f32 %v433, 0.03125
    %v443 = vmul.f32 %v441, 0.03125
    %v444 = vmul.f32 %v442, %v442
    %v445 = vsub.f32 %v443, %v444
    %v446 = vsub.f32 %v425, %v442
    %v447 = vadd.f32 %v445, 1e-05
    %v448 = vrsqrt.pop %v447
    %v449 = vmul.f32 %v446, %v448
    %v450 = vld [vmem:[#allocation10] sm:$0x1]
    %v452 = vlaneseq
    %v453 = vshrl.u32 %v452, 7
    %v454 = vsub.s32 0, %v453
    %v455 = vrot.slane %v450, %v454
    %456 = vrot.lane.b32.xlu0 %v455, 32
    %v457 = vpop.permute.xlu0 %456
    %v459 = vmul.f32 %v449, %v457
    %v460 = vld [vmem:[#allocation11] sm:$0x1]
    %v462 = vlaneseq
    %v463 = vshrl.u32 %v462, 7
    %v464 = vsub.s32 0, %v463
    %v465 = vrot.slane %v460, %v464
    %466 = vrot.lane.b32.xlu0 %v465, 32
    %v467 = vpop.permute.xlu0 %466
    %v469 = vadd.f32 %v459, %v467
    %v470 = vld [vmem:[#allocation13] sm:$0xff]
    %v471 = vld [vmem:[#allocation13 + $0x8] sm:$0xff]
    %v472 = vld [vmem:[#allocation13 + $0x10] sm:$0xff]
    %v473 = vld [vmem:[#allocation13 + $0x18] sm:$0xff]
    %v474 = vld [vmem:[#allocation14] sm:$0x1]
    %v476 = vlaneseq
    %v477 = vshrl.u32 %v476, 7
    %v478 = vsub.s32 0, %v477
    %v479 = vrot.slane %v474, %v478
    %482 = vrot.lane.b32.xlu0 %v469, 96
    %v483 = vpop.permute.xlu0 %482
    %v484 = vsel %vm239, %v483, 0
    %486 = vmatprep.subr.mxu0 0.0
    %487 = vmatpush1.msra.mxu0 %v470
    %488 = vmatprep.subr.mxu0 0.0
    %489 = vmatpush1.msra.mxu0 %v471
    %490 = vmatprep.subr.mxu0 0.0
    %491 = vmatpush1.msra.mxu0 %v472
    %492 = vmatprep.subr.mxu0 0.0
    %493 = vmatpush1.msra.mxu0 %v473
    %494 = vmatprep.subr.mxu0 0.0
    %495 = vmatpush1.msra.mxu0 0.0
    %496 = vmatprep.subr.mxu0 0.0
    %497 = vmatpush1.msra.mxu0 0.0
    %498 = vmatprep.subr.mxu0 0.0
    %499 = vmatpush1.msra.mxu0 0.0
    %500 = vmatprep.subr.mxu0 0.0
    %501 = vmatpush1.msra.mxu0 0.0
    %502 = vmatprep.subr.mxu0 0.0
    %503 = vmatpush1.msra.mxu0 0.0
    %504 = vmatprep.subr.mxu0 0.0
    %505 = vmatpush1.msra.mxu0 0.0
    %506 = vmatprep.subr.mxu0 0.0
    %507 = vmatpush1.msra.mxu0 0.0
    %508 = vmatprep.subr.mxu0 0.0
    %509 = vmatpush1.msra.mxu0 0.0
    %510 = vmatprep.subr.mxu0 0.0
    %511 = vmatpush1.msra.mxu0 0.0
    %512 = vmatprep.subr.mxu0 0.0
    %513 = vmatpush1.msra.mxu0 0.0
    %514 = vmatprep.subr.mxu0 0.0
    %515 = vmatpush1.msra.mxu0 0.0
    %516 = vmatprep.subr.mxu0 0.0
    %517 = vmatpush1.msra.mxu0 0.0
    %518 = vmatprep.subr.mxu0 0.0
    %519 = vmatpush1.msra.mxu0 0.0
    %520 = vmatprep.subr.mxu0 0.0
    %521 = vmatpush1.msra.mxu0 0.0
    %522 = vmatprep.subr.mxu0 0.0
    %523 = vmatpush1.msra.mxu0 0.0
    %524 = vmatprep.subr.mxu0 0.0
    %525 = vmatpush1.msra.mxu0 0.0
    %526 = vmatprep.subr.mxu0 0.0
    %527 = vmatpush1.msra.mxu0 0.0
    %528 = vmatprep.subr.mxu0 0.0
    %529 = vmatpush1.msra.mxu0 0.0
    %530 = vmatprep.subr.mxu0 0.0
    %531 = vmatpush1.msra.mxu0 0.0
    %532 = vmatprep.subr.mxu0 0.0
    %533 = vmatpush1.msra.mxu0 0.0
    %534 = vmatprep.subr.mxu0 0.0
    %535 = vmatpush1.msra.mxu0 0.0
    %536 = vmatprep.subr.mxu0 0.0
    %537 = vmatpush1.msra.mxu0 0.0
    %538 = vmatprep.subr.mxu0 0.0
    %539 = vmatpush1.msra.mxu0 0.0
    %540 = vmatprep.subr.mxu0 0.0
    %541 = vmatpush1.msra.mxu0 0.0
    %542 = vmatprep.subr.mxu0 0.0
    %543 = vmatpush1.msra.mxu0 0.0
    %544 = vmatprep.subr.mxu0 0.0
    %545 = vmatpush1.msra.mxu0 0.0
    %546 = vmatprep.subr.mxu0 0.0
    %547 = vmatpush1.msra.mxu0 0.0
    %548 = vmatprep.subr.mxu0 0.0
    %549 = vmatpush1.msra.mxu0 0.0
    %550 = vmatprep.mubr.f32.mxu0 0.0
    %551 = vmatmul.mubr.f32.gmra.mrb[0].mxu0 %v484
    %v552 = vpop.f32.mrb[0].mxu0
    %v553 = vadd.f32 %v479, %v552
    %v554 = vpop.f32.mrb[0].mxu0
    %555 = vdwg.mxu0
    %556 = vst [vmem:[#allocation17] sm:$0xff] %v553
    // Predicated region
    $region82: #{tpu_custom_call.1} parent=1 // pred_check
      _
    $region83: #{tpu_custom_call.1} parent=1 // pred_check_branch
      %558 = sbr.rel (0) target = $region85
    $region84: #{tpu_custom_call.1} parent=1 // pred_region
      %s560 = ssub.s32 128, 128
      %561 = vsyncadd [#allocation4], %s560
      %s563 = sshll.u32 [#allocation16], 4
      %s564 = int_to_ptr.vmem [resolvable:$true] %s563
      %566 = dma.vmem_to_hbm [thread:$0]  %s564, 128, %s12, [#allocation4]
    $region85: #{tpu_custom_call.1} parent=1 // pred_fallthru
      _
    // Predicated region
    $region86: #{tpu_custom_call.1} parent=1 // pred_check
      _
    $region87: #{tpu_custom_call.1} parent=1 // pred_check_branch
      %568 = sbr.rel (0) target = $region89
    $region88: #{tpu_custom_call.1} parent=1 // pred_region
      %s570 = ssub.s32 128, 128
      %571 = vsyncadd [#allocation18], %s570
      %s573 = sshll.u32 [#allocation17], 4
      %s574 = int_to_ptr.vmem [resolvable:$true] %s573
      %576 = dma.vmem_to_hbm [thread:$0]  %s574, 128, %s13, [#allocation18]
    $region89: #{tpu_custom_call.1} parent=1 // pred_fallthru
      _
    // Predicated region
    $region90: #{tpu_custom_call.1} parent=1 // pred_check
      _
    $region91: #{tpu_custom_call.1} parent=1 // pred_check_branch
      %578 = sbr.rel (0) target = $region93
    $region92: #{tpu_custom_call.1} parent=1 // pred_region
      %579 = dma.done [#allocation4], 128
    $region93: #{tpu_custom_call.1} parent=1 // pred_fallthru
      _
    // Predicated region
    $region94: #{tpu_custom_call.1} parent=1 // pred_check
      _
    $region95: #{tpu_custom_call.1} parent=1 // pred_check_branch
      %581 = sbr.rel (0) target = $region97
    $region96: #{tpu_custom_call.1} parent=1 // pred_region
      %582 = dma.done [#allocation18], 128
    $region97: #{tpu_custom_call.1} parent=1 // pred_fallthru
      _
    %583 = vsyncpa [#allocation3], 1
    %584 = vsyncpa [#allocation6], 1
    %585 = vsyncpa [#allocation9], 1
    %586 = vsyncpa [#allocation12], 1
    %587 = vsyncpa [#allocation15], 1
    %588 = vsyncpa [#allocation4], 1
    %589 = vsyncpa [#allocation18], 1

</llo_original>
